<compile_context>
chip_gen: v6e
topology: v6e:2x2x1
jax: 0.10.0
libtpu: 0.0.40
codegen_flags: <defaults>
</compile_context>

<pallas_src>
import functools

import jax
import jax.numpy as jnp
from jax.experimental import pallas as pl
from jax.experimental.pallas import tpu as pltpu
import numpy as np


def lstm_mlp_kernel(x_ref,                        # (T*B, D_in)   time-major, flattened
                    wih1_ref, whh1_ref, b1_ref,   # (D_in,4H), (H,4H), (1,4H)
                    w2_ref, b2_ref,               # (2H,4H) stacked [Wih2;Whh2], (1,4H)
                    wl1_ref, bl1_ref,             # (H, H2), (1, H2)
                    wl2_ref, bl2_ref,             # (H2, O_pad), (1, O_pad)
                    out_ref,                      # (B, O_pad)
                    *, T, B):
    H = whh1_ref.shape[0]

    # ---- hoisted layer-1 input projection: a single matmul over all timesteps
    g1_all = (jnp.dot(x_ref[...], wih1_ref[...],
                      preferred_element_type=jnp.float32)
              + b1_ref[...])                                   # (T*B, 4H)

    # ---- hoist weight loads / bias broadcast out of the recurrence
    whh1 = whh1_ref[...]
    w2 = w2_ref[...]
    b2 = jnp.broadcast_to(b2_ref[...], (B, 4 * H))

    def gates_to_hc(gates, c_prev):
        # PyTorch gate order: i, f, g, o
        i = jax.nn.sigmoid(gates[:, 0 * H:1 * H])
        f = jax.nn.sigmoid(gates[:, 1 * H:2 * H])
        g = jnp.tanh(gates[:, 2 * H:3 * H])
        o = jax.nn.sigmoid(gates[:, 3 * H:4 * H])
        c_new = f * c_prev + i * g
        return o * jnp.tanh(c_new), c_new

    # h0 = c0 = zeros (matches torch.zeros init in forward()); state stays in vregs.
    z = jnp.zeros((B, H), jnp.float32)
    h1, c1, h2, c2 = z, z, z, z

    # Fully unrolled time loop (T static).
    for t in range(T):
        gates1 = (g1_all[t * B:(t + 1) * B, :]
                  + jnp.dot(h1, whh1, preferred_element_type=jnp.float32))
        h1, c1 = gates_to_hc(gates1, c1)
        # TODO(synk): inter-layer dropout(p=0.2) and self.dropout are identity
        # here (eval-mode semantics); training-mode stochastic dropout omitted.
        xh = jnp.concatenate([h1, h2], axis=1)                 # (B, 2H)
        gates2 = jnp.dot(xh, w2, preferred_element_type=jnp.float32) + b2
        h2, c2 = gates_to_hc(gates2, c2)

    # head: last-timestep hidden of top layer -> l1 -> relu -> l2
    x = jnp.maximum(jnp.dot(h2, wl1_ref[...],
                            preferred_element_type=jnp.float32) + bl1_ref[...],
                    0.0)
    out_ref[...] = (jnp.dot(x, wl2_ref[...],
                            preferred_element_type=jnp.float32) + bl2_ref[...])


def lstm_forward(x_btd, params, hidden, output_size):
    """x_btd: (B, T, D_in) float32, like the PyTorch module's input_seq."""
    B, T, D = x_btd.shape
    H = hidden
    H2 = H // 2

    # Pad batch to a full sublane group (>= 8 rows): vregs/MXU rows already pay
    # for 8 sublanes, so the padded rows are free.
    B_pad = max(8, -(-B // 8) * 8)
    if B_pad != B:
        x_btd = jnp.pad(x_btd, ((0, B_pad - B), (0, 0), (0, 0)))

    # Time-major + flattened so the layer-1 input projection is one matmul.
    x_flat = jnp.transpose(x_btd, (1, 0, 2)).reshape(T * B_pad, D)

    # Lane-dense output store: pad head output width to a 128-lane multiple,
    # slice the real columns back outside the kernel.
    O_pad = max(128, -(-output_size // 128) * 128)
    wl2_t = params["wl2_t"]
    bl2 = params["bl2"]
    if O_pad != output_size:
        wl2_t = jnp.pad(wl2_t, ((0, 0), (0, O_pad - output_size)))
        bl2 = jnp.pad(bl2, ((0, 0), (0, O_pad - output_size)))

    inputs = (
        x_flat,
        params["wih1_t"], params["whh1_t"], params["b1"],
        params["w2cat_t"], params["b2"],
        params["wl1_t"], params["bl1"],
        wl2_t, bl2,
    )

    def full_spec(a):
        nd = a.ndim
        return pl.BlockSpec(a.shape, lambda *_, nd=nd: (0,) * nd,
                            memory_space=pltpu.MemorySpace.VMEM)

    flops = (2 * T * B_pad * D * 4 * H           # hoisted input projection
             + 2 * T * B_pad * H * 4 * H         # recurrent matmul, layer 1
             + 2 * T * B_pad * 2 * H * 4 * H     # fused layer-2 matmul
             + 2 * B_pad * (H * H2 + H2 * O_pad))
    transcendentals = 10 * T * B_pad * H         # 3 sigmoid + 2 tanh per cell, 2 cells
    bytes_accessed = (sum(int(np.prod(a.shape)) * 4 for a in inputs)
                      + B_pad * O_pad * 4)

    out = pl.pallas_call(
        functools.partial(lstm_mlp_kernel, T=T, B=B_pad),
        out_shape=jax.ShapeDtypeStruct((B_pad, O_pad), jnp.float32),
        in_specs=[full_spec(a) for a in inputs],
        out_specs=pl.BlockSpec((B_pad, O_pad), lambda *_: (0, 0),
                               memory_space=pltpu.MemorySpace.VMEM),
        cost_estimate=pl.CostEstimate(flops=flops,
                                      transcendentals=transcendentals,
                                      bytes_accessed=bytes_accessed),
    )(*inputs)
    return out[:B, :output_size]


def init_params(key, input_size, hidden, output_size):
    """Deterministic init mirroring nn.LSTM / nn.Linear shapes (uniform(-k, k))."""
    H, H2 = hidden, hidden // 2
    k_lstm = 1.0 / np.sqrt(H)
    keys = jax.random.split(key, 12)

    def u(k, shape, scale):
        return jax.random.uniform(k, shape, jnp.float32, -scale, scale)

    # layer 0
    w_ih0 = u(keys[0], (4 * H, input_size), k_lstm)
    w_hh0 = u(keys[1], (4 * H, H), k_lstm)
    b_ih0 = u(keys[2], (4 * H,), k_lstm)
    b_hh0 = u(keys[3], (4 * H,), k_lstm)
    # layer 1
    w_ih1 = u(keys[4], (4 * H, H), k_lstm)
    w_hh1 = u(keys[5], (4 * H, H), k_lstm)
    b_ih1 = u(keys[6], (4 * H,), k_lstm)
    b_hh1 = u(keys[7], (4 * H,), k_lstm)
    # head
    k1 = 1.0 / np.sqrt(H)
    w_l1 = u(keys[8], (H2, H), k1)
    b_l1 = u(keys[9], (H2,), k1)
    k2 = 1.0 / np.sqrt(H2)
    w_l2 = u(keys[10], (output_size, H2), k2)
    b_l2 = u(keys[11], (output_size,), k2)

    # Layer-2 gate weights stacked for the fused [h1 | h2] matmul: (2H, 4H).
    w2cat_t = jnp.concatenate([w_ih1.T, w_hh1.T], axis=0)

    return {
        "wih1_t": w_ih0.T, "whh1_t": w_hh0.T, "b1": (b_ih0 + b_hh0)[None, :],
        "w2cat_t": w2cat_t, "b2": (b_ih1 + b_hh1)[None, :],
        "wl1_t": w_l1.T, "bl1": b_l1[None, :],
        "wl2_t": w_l2.T, "bl2": b_l2[None, :],
    }


def reference_forward(x_btd, params, hidden, output_size):
    """Pure-JAX reference (same semantics) for a correctness sanity check."""
    B, T, D = x_btd.shape
    H = hidden

    def gates_to_hc(g, c):
        i = jax.nn.sigmoid(g[:, 0 * H:1 * H])
        f = jax.nn.sigmoid(g[:, 1 * H:2 * H])
        gg = jnp.tanh(g[:, 2 * H:3 * H])
        o = jax.nn.sigmoid(g[:, 3 * H:4 * H])
        c_new = f * c + i * gg
        return o * jnp.tanh(c_new), c_new

    h1 = c1 = h2 = c2 = jnp.zeros((B, H), jnp.float32)
    for t in range(T):
        g1 = x_btd[:, t, :] @ params["wih1_t"] + h1 @ params["whh1_t"] + params["b1"]
        h1, c1 = gates_to_hc(g1, c1)
        g2 = jnp.concatenate([h1, h2], axis=1) @ params["w2cat_t"] + params["b2"]
        h2, c2 = gates_to_hc(g2, c2)
    x = jnp.maximum(h2 @ params["wl1_t"] + params["bl1"], 0.0)
    return x @ params["wl2_t"] + params["bl2"]


if __name__ == "__main__":
    B, T, D_IN = 2, 8, 8
    HIDDEN, OUT = 32, 4

    key = jax.random.PRNGKey(0)
    k_x, k_p = jax.random.split(key)
    x = jax.random.normal(k_x, (B, T, D_IN), jnp.float32)
    params = init_params(k_p, D_IN, HIDDEN, OUT)

    y = lstm_forward(x, params, HIDDEN, OUT)
    y = jax.block_until_ready(y)

    y_ref = reference_forward(x, params, HIDDEN, OUT)
    np.testing.assert_allclose(np.asarray(y), np.asarray(y_ref),
                               rtol=1e-4, atol=1e-4)
    print("KERNEL_OK")
</pallas_src>

<mosaic_0001>
module attributes {stable_mosaic.version = 11 : i64} {
  func.func @lstm_mlp_kernel(%arg0: memref<64x8xf32, #tpu.memory_space<vmem>>, %arg1: memref<8x128xf32, #tpu.memory_space<vmem>>, %arg2: memref<32x128xf32, #tpu.memory_space<vmem>>, %arg3: memref<1x128xf32, #tpu.memory_space<vmem>>, %arg4: memref<64x128xf32, #tpu.memory_space<vmem>>, %arg5: memref<1x128xf32, #tpu.memory_space<vmem>>, %arg6: memref<32x16xf32, #tpu.memory_space<vmem>>, %arg7: memref<1x16xf32, #tpu.memory_space<vmem>>, %arg8: memref<16x128xf32, #tpu.memory_space<vmem>>, %arg9: memref<1x128xf32, #tpu.memory_space<vmem>>, %arg10: memref<8x128xf32, #tpu.memory_space<vmem>>) attributes {dimension_semantics = [], scalar_prefetch = 0 : i64, scratch_operands = 0 : i64, tpu.core_type = #tpu.core_type<tc>} {
    %c0 = arith.constant 0 : index
    %c0_0 = arith.constant 0 : index
    %0 = vector.load %arg0[%c0, %c0_0] : memref<64x8xf32, #tpu.memory_space<vmem>>, vector<64x8xf32>
    %c0_1 = arith.constant 0 : index
    %c0_2 = arith.constant 0 : index
    %1 = vector.load %arg1[%c0_1, %c0_2] : memref<8x128xf32, #tpu.memory_space<vmem>>, vector<8x128xf32>
    %cst = arith.constant dense<0.000000e+00> : vector<64x128xf32>
    %2 = tpu.matmul %0, %1, %cst {dimension_numbers = #tpu.dot_dimension_numbers<[1], [0], [0], [1], [0, 0, 1, 1], [], []>} : vector<64x8xf32>, vector<8x128xf32>, vector<64x128xf32> -> vector<64x128xf32>
    %c0_3 = arith.constant 0 : index
    %c0_4 = arith.constant 0 : index
    %3 = vector.load %arg3[%c0_3, %c0_4] : memref<1x128xf32, #tpu.memory_space<vmem>>, vector<1x128xf32>
    %4 = vector.broadcast %3 : vector<1x128xf32> to vector<64x128xf32>
    %5 = arith.addf %2, %4 : vector<64x128xf32>
    %c0_5 = arith.constant 0 : index
    %c0_6 = arith.constant 0 : index
    %6 = vector.load %arg2[%c0_5, %c0_6] : memref<32x128xf32, #tpu.memory_space<vmem>>, vector<32x128xf32>
    %c0_7 = arith.constant 0 : index
    %c0_8 = arith.constant 0 : index
    %7 = vector.load %arg4[%c0_7, %c0_8] : memref<64x128xf32, #tpu.memory_space<vmem>>, vector<64x128xf32>
    %c0_9 = arith.constant 0 : index
    %c0_10 = arith.constant 0 : index
    %8 = vector.load %arg5[%c0_9, %c0_10] : memref<1x128xf32, #tpu.memory_space<vmem>>, vector<1x128xf32>
    %9 = vector.shape_cast %8 : vector<1x128xf32> to vector<1x128xf32>
    %10 = vector.broadcast %9 : vector<1x128xf32> to vector<8x128xf32>
    %cst_11 = arith.constant 0.000000e+00 : f32
    %11 = vector.broadcast %cst_11 : f32 to vector<8x32xf32>
    %12 = vector.extract_strided_slice %5 {offsets = [0, 0], sizes = [8, 128], strides = [1, 1]} : vector<64x128xf32> to vector<8x128xf32>
    %cst_12 = arith.constant dense<0.000000e+00> : vector<8x128xf32>
    %13 = tpu.matmul %11, %6, %cst_12 {dimension_numbers = #tpu.dot_dimension_numbers<[1], [0], [0], [1], [0, 0, 1, 1], [], []>} : vector<8x32xf32>, vector<32x128xf32>, vector<8x128xf32> -> vector<8x128xf32>
    %14 = arith.addf %12, %13 : vector<8x128xf32>
    %15 = vector.extract_strided_slice %14 {offsets = [0, 0], sizes = [8, 32], strides = [1, 1]} : vector<8x128xf32> to vector<8x32xf32>
    %16 = arith.negf %15 : vector<8x32xf32>
    %17 = math.exp %16 : vector<8x32xf32>
    %cst_13 = arith.constant 1.000000e+00 : f32
    %18 = vector.broadcast %cst_13 : f32 to vector<8x32xf32>
    %19 = arith.addf %18, %17 : vector<8x32xf32>
    %20 = arith.divf %18, %19 : vector<8x32xf32>
    %21 = vector.extract_strided_slice %14 {offsets = [0, 32], sizes = [8, 32], strides = [1, 1]} : vector<8x128xf32> to vector<8x32xf32>
    %22 = arith.negf %21 : vector<8x32xf32>
    %23 = math.exp %22 : vector<8x32xf32>
    %cst_14 = arith.constant 1.000000e+00 : f32
    %24 = vector.broadcast %cst_14 : f32 to vector<8x32xf32>
    %25 = arith.addf %24, %23 : vector<8x32xf32>
    %26 = arith.divf %24, %25 : vector<8x32xf32>
    %27 = vector.extract_strided_slice %14 {offsets = [0, 64], sizes = [8, 32], strides = [1, 1]} : vector<8x128xf32> to vector<8x32xf32>
    %28 = math.tanh %27 : vector<8x32xf32>
    %29 = vector.extract_strided_slice %14 {offsets = [0, 96], sizes = [8, 32], strides = [1, 1]} : vector<8x128xf32> to vector<8x32xf32>
    %30 = arith.negf %29 : vector<8x32xf32>
    %31 = math.exp %30 : vector<8x32xf32>
    %cst_15 = arith.constant 1.000000e+00 : f32
    %32 = vector.broadcast %cst_15 : f32 to vector<8x32xf32>
    %33 = arith.addf %32, %31 : vector<8x32xf32>
    %34 = arith.divf %32, %33 : vector<8x32xf32>
    %35 = arith.mulf %26, %11 : vector<8x32xf32>
    %36 = arith.mulf %20, %28 : vector<8x32xf32>
    %37 = arith.addf %35, %36 : vector<8x32xf32>
    %38 = math.tanh %37 : vector<8x32xf32>
    %39 = arith.mulf %34, %38 : vector<8x32xf32>
    %40 = tpu.concatenate %39, %11 in 1 : vector<8x32xf32>, vector<8x32xf32> -> vector<8x64xf32>
    %cst_16 = arith.constant dense<0.000000e+00> : vector<8x128xf32>
    %41 = tpu.matmul %40, %7, %cst_16 {dimension_numbers = #tpu.dot_dimension_numbers<[1], [0], [0], [1], [0, 0, 1, 1], [], []>} : vector<8x64xf32>, vector<64x128xf32>, vector<8x128xf32> -> vector<8x128xf32>
    %42 = arith.addf %41, %10 : vector<8x128xf32>
    %43 = vector.extract_strided_slice %42 {offsets = [0, 0], sizes = [8, 32], strides = [1, 1]} : vector<8x128xf32> to vector<8x32xf32>
    %44 = arith.negf %43 : vector<8x32xf32>
    %45 = math.exp %44 : vector<8x32xf32>
    %cst_17 = arith.constant 1.000000e+00 : f32
    %46 = vector.broadcast %cst_17 : f32 to vector<8x32xf32>
    %47 = arith.addf %46, %45 : vector<8x32xf32>
    %48 = arith.divf %46, %47 : vector<8x32xf32>
    %49 = vector.extract_strided_slice %42 {offsets = [0, 32], sizes = [8, 32], strides = [1, 1]} : vector<8x128xf32> to vector<8x32xf32>
    %50 = arith.negf %49 : vector<8x32xf32>
    %51 = math.exp %50 : vector<8x32xf32>
    %cst_18 = arith.constant 1.000000e+00 : f32
    %52 = vector.broadcast %cst_18 : f32 to vector<8x32xf32>
    %53 = arith.addf %52, %51 : vector<8x32xf32>
    %54 = arith.divf %52, %53 : vector<8x32xf32>
    %55 = vector.extract_strided_slice %42 {offsets = [0, 64], sizes = [8, 32], strides = [1, 1]} : vector<8x128xf32> to vector<8x32xf32>
    %56 = math.tanh %55 : vector<8x32xf32>
    %57 = vector.extract_strided_slice %42 {offsets = [0, 96], sizes = [8, 32], strides = [1, 1]} : vector<8x128xf32> to vector<8x32xf32>
    %58 = arith.negf %57 : vector<8x32xf32>
    %59 = math.exp %58 : vector<8x32xf32>
    %cst_19 = arith.constant 1.000000e+00 : f32
    %60 = vector.broadcast %cst_19 : f32 to vector<8x32xf32>
    %61 = arith.addf %60, %59 : vector<8x32xf32>
    %62 = arith.divf %60, %61 : vector<8x32xf32>
    %63 = arith.mulf %54, %11 : vector<8x32xf32>
    %64 = arith.mulf %48, %56 : vector<8x32xf32>
    %65 = arith.addf %63, %64 : vector<8x32xf32>
    %66 = math.tanh %65 : vector<8x32xf32>
    %67 = arith.mulf %62, %66 : vector<8x32xf32>
    %68 = vector.extract_strided_slice %5 {offsets = [8, 0], sizes = [8, 128], strides = [1, 1]} : vector<64x128xf32> to vector<8x128xf32>
    %cst_20 = arith.constant dense<0.000000e+00> : vector<8x128xf32>
    %69 = tpu.matmul %39, %6, %cst_20 {dimension_numbers = #tpu.dot_dimension_numbers<[1], [0], [0], [1], [0, 0, 1, 1], [], []>} : vector<8x32xf32>, vector<32x128xf32>, vector<8x128xf32> -> vector<8x128xf32>
    %70 = arith.addf %68, %69 : vector<8x128xf32>
    %71 = vector.extract_strided_slice %70 {offsets = [0, 0], sizes = [8, 32], strides = [1, 1]} : vector<8x128xf32> to vector<8x32xf32>
    %72 = arith.negf %71 : vector<8x32xf32>
    %73 = math.exp %72 : vector<8x32xf32>
    %cst_21 = arith.constant 1.000000e+00 : f32
    %74 = vector.broadcast %cst_21 : f32 to vector<8x32xf32>
    %75 = arith.addf %74, %73 : vector<8x32xf32>
    %76 = arith.divf %74, %75 : vector<8x32xf32>
    %77 = vector.extract_strided_slice %70 {offsets = [0, 32], sizes = [8, 32], strides = [1, 1]} : vector<8x128xf32> to vector<8x32xf32>
    %78 = arith.negf %77 : vector<8x32xf32>
    %79 = math.exp %78 : vector<8x32xf32>
    %cst_22 = arith.constant 1.000000e+00 : f32
    %80 = vector.broadcast %cst_22 : f32 to vector<8x32xf32>
    %81 = arith.addf %80, %79 : vector<8x32xf32>
    %82 = arith.divf %80, %81 : vector<8x32xf32>
    %83 = vector.extract_strided_slice %70 {offsets = [0, 64], sizes = [8, 32], strides = [1, 1]} : vector<8x128xf32> to vector<8x32xf32>
    %84 = math.tanh %83 : vector<8x32xf32>
    %85 = vector.extract_strided_slice %70 {offsets = [0, 96], sizes = [8, 32], strides = [1, 1]} : vector<8x128xf32> to vector<8x32xf32>
    %86 = arith.negf %85 : vector<8x32xf32>
    %87 = math.exp %86 : vector<8x32xf32>
    %cst_23 = arith.constant 1.000000e+00 : f32
    %88 = vector.broadcast %cst_23 : f32 to vector<8x32xf32>
    %89 = arith.addf %88, %87 : vector<8x32xf32>
    %90 = arith.divf %88, %89 : vector<8x32xf32>
    %91 = arith.mulf %82, %37 : vector<8x32xf32>
    %92 = arith.mulf %76, %84 : vector<8x32xf32>
    %93 = arith.addf %91, %92 : vector<8x32xf32>
    %94 = math.tanh %93 : vector<8x32xf32>
    %95 = arith.mulf %90, %94 : vector<8x32xf32>
    %96 = tpu.concatenate %95, %67 in 1 : vector<8x32xf32>, vector<8x32xf32> -> vector<8x64xf32>
    %cst_24 = arith.constant dense<0.000000e+00> : vector<8x128xf32>
    %97 = tpu.matmul %96, %7, %cst_24 {dimension_numbers = #tpu.dot_dimension_numbers<[1], [0], [0], [1], [0, 0, 1, 1], [], []>} : vector<8x64xf32>, vector<64x128xf32>, vector<8x128xf32> -> vector<8x128xf32>
    %98 = arith.addf %97, %10 : vector<8x128xf32>
    %99 = vector.extract_strided_slice %98 {offsets = [0, 0], sizes = [8, 32], strides = [1, 1]} : vector<8x128xf32> to vector<8x32xf32>
    %100 = arith.negf %99 : vector<8x32xf32>
    %101 = math.exp %100 : vector<8x32xf32>
    %cst_25 = arith.constant 1.000000e+00 : f32
    %102 = vector.broadcast %cst_25 : f32 to vector<8x32xf32>
    %103 = arith.addf %102, %101 : vector<8x32xf32>
    %104 = arith.divf %102, %103 : vector<8x32xf32>
    %105 = vector.extract_strided_slice %98 {offsets = [0, 32], sizes = [8, 32], strides = [1, 1]} : vector<8x128xf32> to vector<8x32xf32>
    %106 = arith.negf %105 : vector<8x32xf32>
    %107 = math.exp %106 : vector<8x32xf32>
    %cst_26 = arith.constant 1.000000e+00 : f32
    %108 = vector.broadcast %cst_26 : f32 to vector<8x32xf32>
    %109 = arith.addf %108, %107 : vector<8x32xf32>
    %110 = arith.divf %108, %109 : vector<8x32xf32>
    %111 = vector.extract_strided_slice %98 {offsets = [0, 64], sizes = [8, 32], strides = [1, 1]} : vector<8x128xf32> to vector<8x32xf32>
    %112 = math.tanh %111 : vector<8x32xf32>
    %113 = vector.extract_strided_slice %98 {offsets = [0, 96], sizes = [8, 32], strides = [1, 1]} : vector<8x128xf32> to vector<8x32xf32>
    %114 = arith.negf %113 : vector<8x32xf32>
    %115 = math.exp %114 : vector<8x32xf32>
    %cst_27 = arith.constant 1.000000e+00 : f32
    %116 = vector.broadcast %cst_27 : f32 to vector<8x32xf32>
    %117 = arith.addf %116, %115 : vector<8x32xf32>
    %118 = arith.divf %116, %117 : vector<8x32xf32>
    %119 = arith.mulf %110, %65 : vector<8x32xf32>
    %120 = arith.mulf %104, %112 : vector<8x32xf32>
    %121 = arith.addf %119, %120 : vector<8x32xf32>
    %122 = math.tanh %121 : vector<8x32xf32>
    %123 = arith.mulf %118, %122 : vector<8x32xf32>
    %124 = vector.extract_strided_slice %5 {offsets = [16, 0], sizes = [8, 128], strides = [1, 1]} : vector<64x128xf32> to vector<8x128xf32>
    %cst_28 = arith.constant dense<0.000000e+00> : vector<8x128xf32>
    %125 = tpu.matmul %95, %6, %cst_28 {dimension_numbers = #tpu.dot_dimension_numbers<[1], [0], [0], [1], [0, 0, 1, 1], [], []>} : vector<8x32xf32>, vector<32x128xf32>, vector<8x128xf32> -> vector<8x128xf32>
    %126 = arith.addf %124, %125 : vector<8x128xf32>
    %127 = vector.extract_strided_slice %126 {offsets = [0, 0], sizes = [8, 32], strides = [1, 1]} : vector<8x128xf32> to vector<8x32xf32>
    %128 = arith.negf %127 : vector<8x32xf32>
    %129 = math.exp %128 : vector<8x32xf32>
    %cst_29 = arith.constant 1.000000e+00 : f32
    %130 = vector.broadcast %cst_29 : f32 to vector<8x32xf32>
    %131 = arith.addf %130, %129 : vector<8x32xf32>
    %132 = arith.divf %130, %131 : vector<8x32xf32>
    %133 = vector.extract_strided_slice %126 {offsets = [0, 32], sizes = [8, 32], strides = [1, 1]} : vector<8x128xf32> to vector<8x32xf32>
    %134 = arith.negf %133 : vector<8x32xf32>
    %135 = math.exp %134 : vector<8x32xf32>
    %cst_30 = arith.constant 1.000000e+00 : f32
    %136 = vector.broadcast %cst_30 : f32 to vector<8x32xf32>
    %137 = arith.addf %136, %135 : vector<8x32xf32>
    %138 = arith.divf %136, %137 : vector<8x32xf32>
    %139 = vector.extract_strided_slice %126 {offsets = [0, 64], sizes = [8, 32], strides = [1, 1]} : vector<8x128xf32> to vector<8x32xf32>
    %140 = math.tanh %139 : vector<8x32xf32>
    %141 = vector.extract_strided_slice %126 {offsets = [0, 96], sizes = [8, 32], strides = [1, 1]} : vector<8x128xf32> to vector<8x32xf32>
    %142 = arith.negf %141 : vector<8x32xf32>
    %143 = math.exp %142 : vector<8x32xf32>
    %cst_31 = arith.constant 1.000000e+00 : f32
    %144 = vector.broadcast %cst_31 : f32 to vector<8x32xf32>
    %145 = arith.addf %144, %143 : vector<8x32xf32>
    %146 = arith.divf %144, %145 : vector<8x32xf32>
    %147 = arith.mulf %138, %93 : vector<8x32xf32>
    %148 = arith.mulf %132, %140 : vector<8x32xf32>
    %149 = arith.addf %147, %148 : vector<8x32xf32>
    %150 = math.tanh %149 : vector<8x32xf32>
    %151 = arith.mulf %146, %150 : vector<8x32xf32>
    %152 = tpu.concatenate %151, %123 in 1 : vector<8x32xf32>, vector<8x32xf32> -> vector<8x64xf32>
    %cst_32 = arith.constant dense<0.000000e+00> : vector<8x128xf32>
    %153 = tpu.matmul %152, %7, %cst_32 {dimension_numbers = #tpu.dot_dimension_numbers<[1], [0], [0], [1], [0, 0, 1, 1], [], []>} : vector<8x64xf32>, vector<64x128xf32>, vector<8x128xf32> -> vector<8x128xf32>
    %154 = arith.addf %153, %10 : vector<8x128xf32>
    %155 = vector.extract_strided_slice %154 {offsets = [0, 0], sizes = [8, 32], strides = [1, 1]} : vector<8x128xf32> to vector<8x32xf32>
    %156 = arith.negf %155 : vector<8x32xf32>
    %157 = math.exp %156 : vector<8x32xf32>
    %cst_33 = arith.constant 1.000000e+00 : f32
    %158 = vector.broadcast %cst_33 : f32 to vector<8x32xf32>
    %159 = arith.addf %158, %157 : vector<8x32xf32>
    %160 = arith.divf %158, %159 : vector<8x32xf32>
    %161 = vector.extract_strided_slice %154 {offsets = [0, 32], sizes = [8, 32], strides = [1, 1]} : vector<8x128xf32> to vector<8x32xf32>
    %162 = arith.negf %161 : vector<8x32xf32>
    %163 = math.exp %162 : vector<8x32xf32>
    %cst_34 = arith.constant 1.000000e+00 : f32
    %164 = vector.broadcast %cst_34 : f32 to vector<8x32xf32>
    %165 = arith.addf %164, %163 : vector<8x32xf32>
    %166 = arith.divf %164, %165 : vector<8x32xf32>
    %167 = vector.extract_strided_slice %154 {offsets = [0, 64], sizes = [8, 32], strides = [1, 1]} : vector<8x128xf32> to vector<8x32xf32>
    %168 = math.tanh %167 : vector<8x32xf32>
    %169 = vector.extract_strided_slice %154 {offsets = [0, 96], sizes = [8, 32], strides = [1, 1]} : vector<8x128xf32> to vector<8x32xf32>
    %170 = arith.negf %169 : vector<8x32xf32>
    %171 = math.exp %170 : vector<8x32xf32>
    %cst_35 = arith.constant 1.000000e+00 : f32
    %172 = vector.broadcast %cst_35 : f32 to vector<8x32xf32>
    %173 = arith.addf %172, %171 : vector<8x32xf32>
    %174 = arith.divf %172, %173 : vector<8x32xf32>
    %175 = arith.mulf %166, %121 : vector<8x32xf32>
    %176 = arith.mulf %160, %168 : vector<8x32xf32>
    %177 = arith.addf %175, %176 : vector<8x32xf32>
    %178 = math.tanh %177 : vector<8x32xf32>
    %179 = arith.mulf %174, %178 : vector<8x32xf32>
    %180 = vector.extract_strided_slice %5 {offsets = [24, 0], sizes = [8, 128], strides = [1, 1]} : vector<64x128xf32> to vector<8x128xf32>
    %cst_36 = arith.constant dense<0.000000e+00> : vector<8x128xf32>
    %181 = tpu.matmul %151, %6, %cst_36 {dimension_numbers = #tpu.dot_dimension_numbers<[1], [0], [0], [1], [0, 0, 1, 1], [], []>} : vector<8x32xf32>, vector<32x128xf32>, vector<8x128xf32> -> vector<8x128xf32>
    %182 = arith.addf %180, %181 : vector<8x128xf32>
    %183 = vector.extract_strided_slice %182 {offsets = [0, 0], sizes = [8, 32], strides = [1, 1]} : vector<8x128xf32> to vector<8x32xf32>
    %184 = arith.negf %183 : vector<8x32xf32>
    %185 = math.exp %184 : vector<8x32xf32>
    %cst_37 = arith.constant 1.000000e+00 : f32
    %186 = vector.broadcast %cst_37 : f32 to vector<8x32xf32>
    %187 = arith.addf %186, %185 : vector<8x32xf32>
    %188 = arith.divf %186, %187 : vector<8x32xf32>
    %189 = vector.extract_strided_slice %182 {offsets = [0, 32], sizes = [8, 32], strides = [1, 1]} : vector<8x128xf32> to vector<8x32xf32>
    %190 = arith.negf %189 : vector<8x32xf32>
    %191 = math.exp %190 : vector<8x32xf32>
    %cst_38 = arith.constant 1.000000e+00 : f32
    %192 = vector.broadcast %cst_38 : f32 to vector<8x32xf32>
    %193 = arith.addf %192, %191 : vector<8x32xf32>
    %194 = arith.divf %192, %193 : vector<8x32xf32>
    %195 = vector.extract_strided_slice %182 {offsets = [0, 64], sizes = [8, 32], strides = [1, 1]} : vector<8x128xf32> to vector<8x32xf32>
    %196 = math.tanh %195 : vector<8x32xf32>
    %197 = vector.extract_strided_slice %182 {offsets = [0, 96], sizes = [8, 32], strides = [1, 1]} : vector<8x128xf32> to vector<8x32xf32>
    %198 = arith.negf %197 : vector<8x32xf32>
    %199 = math.exp %198 : vector<8x32xf32>
    %cst_39 = arith.constant 1.000000e+00 : f32
    %200 = vector.broadcast %cst_39 : f32 to vector<8x32xf32>
    %201 = arith.addf %200, %199 : vector<8x32xf32>
    %202 = arith.divf %200, %201 : vector<8x32xf32>
    %203 = arith.mulf %194, %149 : vector<8x32xf32>
    %204 = arith.mulf %188, %196 : vector<8x32xf32>
    %205 = arith.addf %203, %204 : vector<8x32xf32>
    %206 = math.tanh %205 : vector<8x32xf32>
    %207 = arith.mulf %202, %206 : vector<8x32xf32>
    %208 = tpu.concatenate %207, %179 in 1 : vector<8x32xf32>, vector<8x32xf32> -> vector<8x64xf32>
    %cst_40 = arith.constant dense<0.000000e+00> : vector<8x128xf32>
    %209 = tpu.matmul %208, %7, %cst_40 {dimension_numbers = #tpu.dot_dimension_numbers<[1], [0], [0], [1], [0, 0, 1, 1], [], []>} : vector<8x64xf32>, vector<64x128xf32>, vector<8x128xf32> -> vector<8x128xf32>
    %210 = arith.addf %209, %10 : vector<8x128xf32>
    %211 = vector.extract_strided_slice %210 {offsets = [0, 0], sizes = [8, 32], strides = [1, 1]} : vector<8x128xf32> to vector<8x32xf32>
    %212 = arith.negf %211 : vector<8x32xf32>
    %213 = math.exp %212 : vector<8x32xf32>
    %cst_41 = arith.constant 1.000000e+00 : f32
    %214 = vector.broadcast %cst_41 : f32 to vector<8x32xf32>
    %215 = arith.addf %214, %213 : vector<8x32xf32>
    %216 = arith.divf %214, %215 : vector<8x32xf32>
    %217 = vector.extract_strided_slice %210 {offsets = [0, 32], sizes = [8, 32], strides = [1, 1]} : vector<8x128xf32> to vector<8x32xf32>
    %218 = arith.negf %217 : vector<8x32xf32>
    %219 = math.exp %218 : vector<8x32xf32>
    %cst_42 = arith.constant 1.000000e+00 : f32
    %220 = vector.broadcast %cst_42 : f32 to vector<8x32xf32>
    %221 = arith.addf %220, %219 : vector<8x32xf32>
    %222 = arith.divf %220, %221 : vector<8x32xf32>
    %223 = vector.extract_strided_slice %210 {offsets = [0, 64], sizes = [8, 32], strides = [1, 1]} : vector<8x128xf32> to vector<8x32xf32>
    %224 = math.tanh %223 : vector<8x32xf32>
    %225 = vector.extract_strided_slice %210 {offsets = [0, 96], sizes = [8, 32], strides = [1, 1]} : vector<8x128xf32> to vector<8x32xf32>
    %226 = arith.negf %225 : vector<8x32xf32>
    %227 = math.exp %226 : vector<8x32xf32>
    %cst_43 = arith.constant 1.000000e+00 : f32
    %228 = vector.broadcast %cst_43 : f32 to vector<8x32xf32>
    %229 = arith.addf %228, %227 : vector<8x32xf32>
    %230 = arith.divf %228, %229 : vector<8x32xf32>
    %231 = arith.mulf %222, %177 : vector<8x32xf32>
    %232 = arith.mulf %216, %224 : vector<8x32xf32>
    %233 = arith.addf %231, %232 : vector<8x32xf32>
    %234 = math.tanh %233 : vector<8x32xf32>
    %235 = arith.mulf %230, %234 : vector<8x32xf32>
    %236 = vector.extract_strided_slice %5 {offsets = [32, 0], sizes = [8, 128], strides = [1, 1]} : vector<64x128xf32> to vector<8x128xf32>
    %cst_44 = arith.constant dense<0.000000e+00> : vector<8x128xf32>
    %237 = tpu.matmul %207, %6, %cst_44 {dimension_numbers = #tpu.dot_dimension_numbers<[1], [0], [0], [1], [0, 0, 1, 1], [], []>} : vector<8x32xf32>, vector<32x128xf32>, vector<8x128xf32> -> vector<8x128xf32>
    %238 = arith.addf %236, %237 : vector<8x128xf32>
    %239 = vector.extract_strided_slice %238 {offsets = [0, 0], sizes = [8, 32], strides = [1, 1]} : vector<8x128xf32> to vector<8x32xf32>
    %240 = arith.negf %239 : vector<8x32xf32>
    %241 = math.exp %240 : vector<8x32xf32>
    %cst_45 = arith.constant 1.000000e+00 : f32
    %242 = vector.broadcast %cst_45 : f32 to vector<8x32xf32>
    %243 = arith.addf %242, %241 : vector<8x32xf32>
    %244 = arith.divf %242, %243 : vector<8x32xf32>
    %245 = vector.extract_strided_slice %238 {offsets = [0, 32], sizes = [8, 32], strides = [1, 1]} : vector<8x128xf32> to vector<8x32xf32>
    %246 = arith.negf %245 : vector<8x32xf32>
    %247 = math.exp %246 : vector<8x32xf32>
    %cst_46 = arith.constant 1.000000e+00 : f32
    %248 = vector.broadcast %cst_46 : f32 to vector<8x32xf32>
    %249 = arith.addf %248, %247 : vector<8x32xf32>
    %250 = arith.divf %248, %249 : vector<8x32xf32>
    %251 = vector.extract_strided_slice %238 {offsets = [0, 64], sizes = [8, 32], strides = [1, 1]} : vector<8x128xf32> to vector<8x32xf32>
    %252 = math.tanh %251 : vector<8x32xf32>
    %253 = vector.extract_strided_slice %238 {offsets = [0, 96], sizes = [8, 32], strides = [1, 1]} : vector<8x128xf32> to vector<8x32xf32>
    %254 = arith.negf %253 : vector<8x32xf32>
    %255 = math.exp %254 : vector<8x32xf32>
    %cst_47 = arith.constant 1.000000e+00 : f32
    %256 = vector.broadcast %cst_47 : f32 to vector<8x32xf32>
    %257 = arith.addf %256, %255 : vector<8x32xf32>
    %258 = arith.divf %256, %257 : vector<8x32xf32>
    %259 = arith.mulf %250, %205 : vector<8x32xf32>
    %260 = arith.mulf %244, %252 : vector<8x32xf32>
    %261 = arith.addf %259, %260 : vector<8x32xf32>
    %262 = math.tanh %261 : vector<8x32xf32>
    %263 = arith.mulf %258, %262 : vector<8x32xf32>
    %264 = tpu.concatenate %263, %235 in 1 : vector<8x32xf32>, vector<8x32xf32> -> vector<8x64xf32>
    %cst_48 = arith.constant dense<0.000000e+00> : vector<8x128xf32>
    %265 = tpu.matmul %264, %7, %cst_48 {dimension_numbers = #tpu.dot_dimension_numbers<[1], [0], [0], [1], [0, 0, 1, 1], [], []>} : vector<8x64xf32>, vector<64x128xf32>, vector<8x128xf32> -> vector<8x128xf32>
    %266 = arith.addf %265, %10 : vector<8x128xf32>
    %267 = vector.extract_strided_slice %266 {offsets = [0, 0], sizes = [8, 32], strides = [1, 1]} : vector<8x128xf32> to vector<8x32xf32>
    %268 = arith.negf %267 : vector<8x32xf32>
    %269 = math.exp %268 : vector<8x32xf32>
    %cst_49 = arith.constant 1.000000e+00 : f32
    %270 = vector.broadcast %cst_49 : f32 to vector<8x32xf32>
    %271 = arith.addf %270, %269 : vector<8x32xf32>
    %272 = arith.divf %270, %271 : vector<8x32xf32>
    %273 = vector.extract_strided_slice %266 {offsets = [0, 32], sizes = [8, 32], strides = [1, 1]} : vector<8x128xf32> to vector<8x32xf32>
    %274 = arith.negf %273 : vector<8x32xf32>
    %275 = math.exp %274 : vector<8x32xf32>
    %cst_50 = arith.constant 1.000000e+00 : f32
    %276 = vector.broadcast %cst_50 : f32 to vector<8x32xf32>
    %277 = arith.addf %276, %275 : vector<8x32xf32>
    %278 = arith.divf %276, %277 : vector<8x32xf32>
    %279 = vector.extract_strided_slice %266 {offsets = [0, 64], sizes = [8, 32], strides = [1, 1]} : vector<8x128xf32> to vector<8x32xf32>
    %280 = math.tanh %279 : vector<8x32xf32>
    %281 = vector.extract_strided_slice %266 {offsets = [0, 96], sizes = [8, 32], strides = [1, 1]} : vector<8x128xf32> to vector<8x32xf32>
    %282 = arith.negf %281 : vector<8x32xf32>
    %283 = math.exp %282 : vector<8x32xf32>
    %cst_51 = arith.constant 1.000000e+00 : f32
    %284 = vector.broadcast %cst_51 : f32 to vector<8x32xf32>
    %285 = arith.addf %284, %283 : vector<8x32xf32>
    %286 = arith.divf %284, %285 : vector<8x32xf32>
    %287 = arith.mulf %278, %233 : vector<8x32xf32>
    %288 = arith.mulf %272, %280 : vector<8x32xf32>
    %289 = arith.addf %287, %288 : vector<8x32xf32>
    %290 = math.tanh %289 : vector<8x32xf32>
    %291 = arith.mulf %286, %290 : vector<8x32xf32>
    %292 = vector.extract_strided_slice %5 {offsets = [40, 0], sizes = [8, 128], strides = [1, 1]} : vector<64x128xf32> to vector<8x128xf32>
    %cst_52 = arith.constant dense<0.000000e+00> : vector<8x128xf32>
    %293 = tpu.matmul %263, %6, %cst_52 {dimension_numbers = #tpu.dot_dimension_numbers<[1], [0], [0], [1], [0, 0, 1, 1], [], []>} : vector<8x32xf32>, vector<32x128xf32>, vector<8x128xf32> -> vector<8x128xf32>
    %294 = arith.addf %292, %293 : vector<8x128xf32>
    %295 = vector.extract_strided_slice %294 {offsets = [0, 0], sizes = [8, 32], strides = [1, 1]} : vector<8x128xf32> to vector<8x32xf32>
    %296 = arith.negf %295 : vector<8x32xf32>
    %297 = math.exp %296 : vector<8x32xf32>
    %cst_53 = arith.constant 1.000000e+00 : f32
    %298 = vector.broadcast %cst_53 : f32 to vector<8x32xf32>
    %299 = arith.addf %298, %297 : vector<8x32xf32>
    %300 = arith.divf %298, %299 : vector<8x32xf32>
    %301 = vector.extract_strided_slice %294 {offsets = [0, 32], sizes = [8, 32], strides = [1, 1]} : vector<8x128xf32> to vector<8x32xf32>
    %302 = arith.negf %301 : vector<8x32xf32>
    %303 = math.exp %302 : vector<8x32xf32>
    %cst_54 = arith.constant 1.000000e+00 : f32
    %304 = vector.broadcast %cst_54 : f32 to vector<8x32xf32>
    %305 = arith.addf %304, %303 : vector<8x32xf32>
    %306 = arith.divf %304, %305 : vector<8x32xf32>
    %307 = vector.extract_strided_slice %294 {offsets = [0, 64], sizes = [8, 32], strides = [1, 1]} : vector<8x128xf32> to vector<8x32xf32>
    %308 = math.tanh %307 : vector<8x32xf32>
    %309 = vector.extract_strided_slice %294 {offsets = [0, 96], sizes = [8, 32], strides = [1, 1]} : vector<8x128xf32> to vector<8x32xf32>
    %310 = arith.negf %309 : vector<8x32xf32>
    %311 = math.exp %310 : vector<8x32xf32>
    %cst_55 = arith.constant 1.000000e+00 : f32
    %312 = vector.broadcast %cst_55 : f32 to vector<8x32xf32>
    %313 = arith.addf %312, %311 : vector<8x32xf32>
    %314 = arith.divf %312, %313 : vector<8x32xf32>
    %315 = arith.mulf %306, %261 : vector<8x32xf32>
    %316 = arith.mulf %300, %308 : vector<8x32xf32>
    %317 = arith.addf %315, %316 : vector<8x32xf32>
    %318 = math.tanh %317 : vector<8x32xf32>
    %319 = arith.mulf %314, %318 : vector<8x32xf32>
    %320 = tpu.concatenate %319, %291 in 1 : vector<8x32xf32>, vector<8x32xf32> -> vector<8x64xf32>
    %cst_56 = arith.constant dense<0.000000e+00> : vector<8x128xf32>
    %321 = tpu.matmul %320, %7, %cst_56 {dimension_numbers = #tpu.dot_dimension_numbers<[1], [0], [0], [1], [0, 0, 1, 1], [], []>} : vector<8x64xf32>, vector<64x128xf32>, vector<8x128xf32> -> vector<8x128xf32>
    %322 = arith.addf %321, %10 : vector<8x128xf32>
    %323 = vector.extract_strided_slice %322 {offsets = [0, 0], sizes = [8, 32], strides = [1, 1]} : vector<8x128xf32> to vector<8x32xf32>
    %324 = arith.negf %323 : vector<8x32xf32>
    %325 = math.exp %324 : vector<8x32xf32>
    %cst_57 = arith.constant 1.000000e+00 : f32
    %326 = vector.broadcast %cst_57 : f32 to vector<8x32xf32>
    %327 = arith.addf %326, %325 : vector<8x32xf32>
    %328 = arith.divf %326, %327 : vector<8x32xf32>
    %329 = vector.extract_strided_slice %322 {offsets = [0, 32], sizes = [8, 32], strides = [1, 1]} : vector<8x128xf32> to vector<8x32xf32>
    %330 = arith.negf %329 : vector<8x32xf32>
    %331 = math.exp %330 : vector<8x32xf32>
    %cst_58 = arith.constant 1.000000e+00 : f32
    %332 = vector.broadcast %cst_58 : f32 to vector<8x32xf32>
    %333 = arith.addf %332, %331 : vector<8x32xf32>
    %334 = arith.divf %332, %333 : vector<8x32xf32>
    %335 = vector.extract_strided_slice %322 {offsets = [0, 64], sizes = [8, 32], strides = [1, 1]} : vector<8x128xf32> to vector<8x32xf32>
    %336 = math.tanh %335 : vector<8x32xf32>
    %337 = vector.extract_strided_slice %322 {offsets = [0, 96], sizes = [8, 32], strides = [1, 1]} : vector<8x128xf32> to vector<8x32xf32>
    %338 = arith.negf %337 : vector<8x32xf32>
    %339 = math.exp %338 : vector<8x32xf32>
    %cst_59 = arith.constant 1.000000e+00 : f32
    %340 = vector.broadcast %cst_59 : f32 to vector<8x32xf32>
    %341 = arith.addf %340, %339 : vector<8x32xf32>
    %342 = arith.divf %340, %341 : vector<8x32xf32>
    %343 = arith.mulf %334, %289 : vector<8x32xf32>
    %344 = arith.mulf %328, %336 : vector<8x32xf32>
    %345 = arith.addf %343, %344 : vector<8x32xf32>
    %346 = math.tanh %345 : vector<8x32xf32>
    %347 = arith.mulf %342, %346 : vector<8x32xf32>
    %348 = vector.extract_strided_slice %5 {offsets = [48, 0], sizes = [8, 128], strides = [1, 1]} : vector<64x128xf32> to vector<8x128xf32>
    %cst_60 = arith.constant dense<0.000000e+00> : vector<8x128xf32>
    %349 = tpu.matmul %319, %6, %cst_60 {dimension_numbers = #tpu.dot_dimension_numbers<[1], [0], [0], [1], [0, 0, 1, 1], [], []>} : vector<8x32xf32>, vector<32x128xf32>, vector<8x128xf32> -> vector<8x128xf32>
    %350 = arith.addf %348, %349 : vector<8x128xf32>
    %351 = vector.extract_strided_slice %350 {offsets = [0, 0], sizes = [8, 32], strides = [1, 1]} : vector<8x128xf32> to vector<8x32xf32>
    %352 = arith.negf %351 : vector<8x32xf32>
    %353 = math.exp %352 : vector<8x32xf32>
    %cst_61 = arith.constant 1.000000e+00 : f32
    %354 = vector.broadcast %cst_61 : f32 to vector<8x32xf32>
    %355 = arith.addf %354, %353 : vector<8x32xf32>
    %356 = arith.divf %354, %355 : vector<8x32xf32>
    %357 = vector.extract_strided_slice %350 {offsets = [0, 32], sizes = [8, 32], strides = [1, 1]} : vector<8x128xf32> to vector<8x32xf32>
    %358 = arith.negf %357 : vector<8x32xf32>
    %359 = math.exp %358 : vector<8x32xf32>
    %cst_62 = arith.constant 1.000000e+00 : f32
    %360 = vector.broadcast %cst_62 : f32 to vector<8x32xf32>
    %361 = arith.addf %360, %359 : vector<8x32xf32>
    %362 = arith.divf %360, %361 : vector<8x32xf32>
    %363 = vector.extract_strided_slice %350 {offsets = [0, 64], sizes = [8, 32], strides = [1, 1]} : vector<8x128xf32> to vector<8x32xf32>
    %364 = math.tanh %363 : vector<8x32xf32>
    %365 = vector.extract_strided_slice %350 {offsets = [0, 96], sizes = [8, 32], strides = [1, 1]} : vector<8x128xf32> to vector<8x32xf32>
    %366 = arith.negf %365 : vector<8x32xf32>
    %367 = math.exp %366 : vector<8x32xf32>
    %cst_63 = arith.constant 1.000000e+00 : f32
    %368 = vector.broadcast %cst_63 : f32 to vector<8x32xf32>
    %369 = arith.addf %368, %367 : vector<8x32xf32>
    %370 = arith.divf %368, %369 : vector<8x32xf32>
    %371 = arith.mulf %362, %317 : vector<8x32xf32>
    %372 = arith.mulf %356, %364 : vector<8x32xf32>
    %373 = arith.addf %371, %372 : vector<8x32xf32>
    %374 = math.tanh %373 : vector<8x32xf32>
    %375 = arith.mulf %370, %374 : vector<8x32xf32>
    %376 = tpu.concatenate %375, %347 in 1 : vector<8x32xf32>, vector<8x32xf32> -> vector<8x64xf32>
    %cst_64 = arith.constant dense<0.000000e+00> : vector<8x128xf32>
    %377 = tpu.matmul %376, %7, %cst_64 {dimension_numbers = #tpu.dot_dimension_numbers<[1], [0], [0], [1], [0, 0, 1, 1], [], []>} : vector<8x64xf32>, vector<64x128xf32>, vector<8x128xf32> -> vector<8x128xf32>
    %378 = arith.addf %377, %10 : vector<8x128xf32>
    %379 = vector.extract_strided_slice %378 {offsets = [0, 0], sizes = [8, 32], strides = [1, 1]} : vector<8x128xf32> to vector<8x32xf32>
    %380 = arith.negf %379 : vector<8x32xf32>
    %381 = math.exp %380 : vector<8x32xf32>
    %cst_65 = arith.constant 1.000000e+00 : f32
    %382 = vector.broadcast %cst_65 : f32 to vector<8x32xf32>
    %383 = arith.addf %382, %381 : vector<8x32xf32>
    %384 = arith.divf %382, %383 : vector<8x32xf32>
    %385 = vector.extract_strided_slice %378 {offsets = [0, 32], sizes = [8, 32], strides = [1, 1]} : vector<8x128xf32> to vector<8x32xf32>
    %386 = arith.negf %385 : vector<8x32xf32>
    %387 = math.exp %386 : vector<8x32xf32>
    %cst_66 = arith.constant 1.000000e+00 : f32
    %388 = vector.broadcast %cst_66 : f32 to vector<8x32xf32>
    %389 = arith.addf %388, %387 : vector<8x32xf32>
    %390 = arith.divf %388, %389 : vector<8x32xf32>
    %391 = vector.extract_strided_slice %378 {offsets = [0, 64], sizes = [8, 32], strides = [1, 1]} : vector<8x128xf32> to vector<8x32xf32>
    %392 = math.tanh %391 : vector<8x32xf32>
    %393 = vector.extract_strided_slice %378 {offsets = [0, 96], sizes = [8, 32], strides = [1, 1]} : vector<8x128xf32> to vector<8x32xf32>
    %394 = arith.negf %393 : vector<8x32xf32>
    %395 = math.exp %394 : vector<8x32xf32>
    %cst_67 = arith.constant 1.000000e+00 : f32
    %396 = vector.broadcast %cst_67 : f32 to vector<8x32xf32>
    %397 = arith.addf %396, %395 : vector<8x32xf32>
    %398 = arith.divf %396, %397 : vector<8x32xf32>
    %399 = arith.mulf %390, %345 : vector<8x32xf32>
    %400 = arith.mulf %384, %392 : vector<8x32xf32>
    %401 = arith.addf %399, %400 : vector<8x32xf32>
    %402 = math.tanh %401 : vector<8x32xf32>
    %403 = arith.mulf %398, %402 : vector<8x32xf32>
    %404 = vector.extract_strided_slice %5 {offsets = [56, 0], sizes = [8, 128], strides = [1, 1]} : vector<64x128xf32> to vector<8x128xf32>
    %cst_68 = arith.constant dense<0.000000e+00> : vector<8x128xf32>
    %405 = tpu.matmul %375, %6, %cst_68 {dimension_numbers = #tpu.dot_dimension_numbers<[1], [0], [0], [1], [0, 0, 1, 1], [], []>} : vector<8x32xf32>, vector<32x128xf32>, vector<8x128xf32> -> vector<8x128xf32>
    %406 = arith.addf %404, %405 : vector<8x128xf32>
    %407 = vector.extract_strided_slice %406 {offsets = [0, 0], sizes = [8, 32], strides = [1, 1]} : vector<8x128xf32> to vector<8x32xf32>
    %408 = arith.negf %407 : vector<8x32xf32>
    %409 = math.exp %408 : vector<8x32xf32>
    %cst_69 = arith.constant 1.000000e+00 : f32
    %410 = vector.broadcast %cst_69 : f32 to vector<8x32xf32>
    %411 = arith.addf %410, %409 : vector<8x32xf32>
    %412 = arith.divf %410, %411 : vector<8x32xf32>
    %413 = vector.extract_strided_slice %406 {offsets = [0, 32], sizes = [8, 32], strides = [1, 1]} : vector<8x128xf32> to vector<8x32xf32>
    %414 = arith.negf %413 : vector<8x32xf32>
    %415 = math.exp %414 : vector<8x32xf32>
    %cst_70 = arith.constant 1.000000e+00 : f32
    %416 = vector.broadcast %cst_70 : f32 to vector<8x32xf32>
    %417 = arith.addf %416, %415 : vector<8x32xf32>
    %418 = arith.divf %416, %417 : vector<8x32xf32>
    %419 = vector.extract_strided_slice %406 {offsets = [0, 64], sizes = [8, 32], strides = [1, 1]} : vector<8x128xf32> to vector<8x32xf32>
    %420 = math.tanh %419 : vector<8x32xf32>
    %421 = vector.extract_strided_slice %406 {offsets = [0, 96], sizes = [8, 32], strides = [1, 1]} : vector<8x128xf32> to vector<8x32xf32>
    %422 = arith.negf %421 : vector<8x32xf32>
    %423 = math.exp %422 : vector<8x32xf32>
    %cst_71 = arith.constant 1.000000e+00 : f32
    %424 = vector.broadcast %cst_71 : f32 to vector<8x32xf32>
    %425 = arith.addf %424, %423 : vector<8x32xf32>
    %426 = arith.divf %424, %425 : vector<8x32xf32>
    %427 = arith.mulf %418, %373 : vector<8x32xf32>
    %428 = arith.mulf %412, %420 : vector<8x32xf32>
    %429 = arith.addf %427, %428 : vector<8x32xf32>
    %430 = math.tanh %429 : vector<8x32xf32>
    %431 = arith.mulf %426, %430 : vector<8x32xf32>
    %432 = tpu.concatenate %431, %403 in 1 : vector<8x32xf32>, vector<8x32xf32> -> vector<8x64xf32>
    %cst_72 = arith.constant dense<0.000000e+00> : vector<8x128xf32>
    %433 = tpu.matmul %432, %7, %cst_72 {dimension_numbers = #tpu.dot_dimension_numbers<[1], [0], [0], [1], [0, 0, 1, 1], [], []>} : vector<8x64xf32>, vector<64x128xf32>, vector<8x128xf32> -> vector<8x128xf32>
    %434 = arith.addf %433, %10 : vector<8x128xf32>
    %435 = vector.extract_strided_slice %434 {offsets = [0, 0], sizes = [8, 32], strides = [1, 1]} : vector<8x128xf32> to vector<8x32xf32>
    %436 = arith.negf %435 : vector<8x32xf32>
    %437 = math.exp %436 : vector<8x32xf32>
    %cst_73 = arith.constant 1.000000e+00 : f32
    %438 = vector.broadcast %cst_73 : f32 to vector<8x32xf32>
    %439 = arith.addf %438, %437 : vector<8x32xf32>
    %440 = arith.divf %438, %439 : vector<8x32xf32>
    %441 = vector.extract_strided_slice %434 {offsets = [0, 32], sizes = [8, 32], strides = [1, 1]} : vector<8x128xf32> to vector<8x32xf32>
    %442 = arith.negf %441 : vector<8x32xf32>
    %443 = math.exp %442 : vector<8x32xf32>
    %cst_74 = arith.constant 1.000000e+00 : f32
    %444 = vector.broadcast %cst_74 : f32 to vector<8x32xf32>
    %445 = arith.addf %444, %443 : vector<8x32xf32>
    %446 = arith.divf %444, %445 : vector<8x32xf32>
    %447 = vector.extract_strided_slice %434 {offsets = [0, 64], sizes = [8, 32], strides = [1, 1]} : vector<8x128xf32> to vector<8x32xf32>
    %448 = math.tanh %447 : vector<8x32xf32>
    %449 = vector.extract_strided_slice %434 {offsets = [0, 96], sizes = [8, 32], strides = [1, 1]} : vector<8x128xf32> to vector<8x32xf32>
    %450 = arith.negf %449 : vector<8x32xf32>
    %451 = math.exp %450 : vector<8x32xf32>
    %cst_75 = arith.constant 1.000000e+00 : f32
    %452 = vector.broadcast %cst_75 : f32 to vector<8x32xf32>
    %453 = arith.addf %452, %451 : vector<8x32xf32>
    %454 = arith.divf %452, %453 : vector<8x32xf32>
    %455 = arith.mulf %446, %401 : vector<8x32xf32>
    %456 = arith.mulf %440, %448 : vector<8x32xf32>
    %457 = arith.addf %455, %456 : vector<8x32xf32>
    %458 = math.tanh %457 : vector<8x32xf32>
    %459 = arith.mulf %454, %458 : vector<8x32xf32>
    %c0_76 = arith.constant 0 : index
    %c0_77 = arith.constant 0 : index
    %460 = vector.load %arg6[%c0_76, %c0_77] : memref<32x16xf32, #tpu.memory_space<vmem>>, vector<32x16xf32>
    %cst_78 = arith.constant dense<0.000000e+00> : vector<8x16xf32>
    %461 = tpu.matmul %459, %460, %cst_78 {dimension_numbers = #tpu.dot_dimension_numbers<[1], [0], [0], [1], [0, 0, 1, 1], [], []>} : vector<8x32xf32>, vector<32x16xf32>, vector<8x16xf32> -> vector<8x16xf32>
    %c0_79 = arith.constant 0 : index
    %c0_80 = arith.constant 0 : index
    %462 = vector.load %arg7[%c0_79, %c0_80] : memref<1x16xf32, #tpu.memory_space<vmem>>, vector<1x16xf32>
    %463 = vector.broadcast %462 : vector<1x16xf32> to vector<8x16xf32>
    %464 = arith.addf %461, %463 : vector<8x16xf32>
    %cst_81 = arith.constant 0.000000e+00 : f32
    %465 = vector.broadcast %cst_81 : f32 to vector<8x16xf32>
    %466 = arith.maximumf %464, %465 : vector<8x16xf32>
    %c0_82 = arith.constant 0 : index
    %c0_83 = arith.constant 0 : index
    %467 = vector.load %arg8[%c0_82, %c0_83] : memref<16x128xf32, #tpu.memory_space<vmem>>, vector<16x128xf32>
    %cst_84 = arith.constant dense<0.000000e+00> : vector<8x128xf32>
    %468 = tpu.matmul %466, %467, %cst_84 {dimension_numbers = #tpu.dot_dimension_numbers<[1], [0], [0], [1], [0, 0, 1, 1], [], []>} : vector<8x16xf32>, vector<16x128xf32>, vector<8x128xf32> -> vector<8x128xf32>
    %c0_85 = arith.constant 0 : index
    %c0_86 = arith.constant 0 : index
    %469 = vector.load %arg9[%c0_85, %c0_86] : memref<1x128xf32, #tpu.memory_space<vmem>>, vector<1x128xf32>
    %470 = vector.broadcast %469 : vector<1x128xf32> to vector<8x128xf32>
    %471 = arith.addf %468, %470 : vector<8x128xf32>
    %c0_87 = arith.constant 0 : index
    %c0_88 = arith.constant 0 : index
    %472 = vector.load %arg10[%c0_87, %c0_88] : memref<8x128xf32, #tpu.memory_space<vmem>>, vector<8x128xf32>
    tpu.vector_store %arg10[%c0_87, %c0_88], %471 {strides = array<i32>} : memref<8x128xf32, #tpu.memory_space<vmem>>, vector<8x128xf32>,
    return
  }
}

</mosaic_0001>

<llo_original>
// kernel: tpu_custom_call.1
$region0: #{tpu_custom_call.1}
  #allocation0 [shape = 'u32[]', space=smem, size = 0x4, offset = 0x4, fixed_abs, tag = 'smem constant byte address 0x4 - core index']
  #allocation1 [shape = 'u32[144,128]{1,0:T(1,128)}', space=vmem, size = 0x12000, scoped, tag = 'internal scratch']
  %s0 = inlined_call_operand.vmem [shape: f32[64,8], index: 0, kind: input, shape index: {}]
  %s1 = inlined_call_operand.vmem [shape: f32[8,128], index: 1, kind: input, shape index: {}]
  %s2 = inlined_call_operand.vmem [shape: f32[32,128], index: 2, kind: input, shape index: {}]
  %s3 = inlined_call_operand.vmem [shape: f32[1,128], index: 3, kind: input, shape index: {}]
  %s4 = inlined_call_operand.vmem [shape: f32[64,128], index: 4, kind: input, shape index: {}]
  %s5 = inlined_call_operand.vmem [shape: f32[1,128], index: 5, kind: input, shape index: {}]
  %s6 = inlined_call_operand.vmem [shape: f32[32,16], index: 6, kind: input, shape index: {}]
  %s7 = inlined_call_operand.vmem [shape: f32[1,16], index: 7, kind: input, shape index: {}]
  %s8 = inlined_call_operand.vmem [shape: f32[16,128], index: 8, kind: input, shape index: {}]
  %s9 = inlined_call_operand.vmem [shape: f32[1,128], index: 9, kind: input, shape index: {}]
  %s10 = inlined_call_operand.hbm [shape: f32[8,128], index: 10, kind: output, shape index: {}]
  %s11 = sld [smem:[#allocation0]]
  $region50: #{tpu_custom_call.1} parent=0
    _
  %s13 = ssub.s32 1, %s11
  %s14 = scalar_select 0, %s13, %s11
  $region1: #{tpu_custom_call.1} parent=0
    #allocation2 [shape = 'u8[4096]{0}', space=vmem, size = 0x1000, scoped, tag = 'output window, operand 0, single buffered']
    #allocation3 [shape = 's32[1]{0}', space=sflag, size = 0x4, scoped, tag = 'scoped memory for tpu_custom_call.1']
    %15 = vsyncpa [#allocation3], 0
    // Predicated region
    $region2: #{tpu_custom_call.1} parent=1 // pred_check
      _
    $region3: #{tpu_custom_call.1} parent=1 // pred_check_branch
      %17 = sbr.rel (0) target = $region5
    $region4: #{tpu_custom_call.1} parent=1 // pred_region
      _
    $region5: #{tpu_custom_call.1} parent=1 // pred_fallthru
      _
    // Predicated region
    $region6: #{tpu_custom_call.1} parent=1 // pred_check
      _
    $region7: #{tpu_custom_call.1} parent=1 // pred_check_branch
      %19 = sbr.rel (0) target = $region9
    $region8: #{tpu_custom_call.1} parent=1 // pred_region
      _
    $region9: #{tpu_custom_call.1} parent=1 // pred_fallthru
      _
    // Predicated region
    $region10: #{tpu_custom_call.1} parent=1 // pred_check
      _
    $region11: #{tpu_custom_call.1} parent=1 // pred_check_branch
      %21 = sbr.rel (0) target = $region13
    $region12: #{tpu_custom_call.1} parent=1 // pred_region
      _
    $region13: #{tpu_custom_call.1} parent=1 // pred_fallthru
      _
    // Predicated region
    $region14: #{tpu_custom_call.1} parent=1 // pred_check
      _
    $region15: #{tpu_custom_call.1} parent=1 // pred_check_branch
      %23 = sbr.rel (0) target = $region17
    $region16: #{tpu_custom_call.1} parent=1 // pred_region
      _
    $region17: #{tpu_custom_call.1} parent=1 // pred_fallthru
      _
    // Predicated region
    $region18: #{tpu_custom_call.1} parent=1 // pred_check
      _
    $region19: #{tpu_custom_call.1} parent=1 // pred_check_branch
      %25 = sbr.rel (0) target = $region21
    $region20: #{tpu_custom_call.1} parent=1 // pred_region
      _
    $region21: #{tpu_custom_call.1} parent=1 // pred_fallthru
      _
    // Predicated region
    $region22: #{tpu_custom_call.1} parent=1 // pred_check
      _
    $region23: #{tpu_custom_call.1} parent=1 // pred_check_branch
      %27 = sbr.rel (0) target = $region25
    $region24: #{tpu_custom_call.1} parent=1 // pred_region
      _
    $region25: #{tpu_custom_call.1} parent=1 // pred_fallthru
      _
    // Predicated region
    $region26: #{tpu_custom_call.1} parent=1 // pred_check
      _
    $region27: #{tpu_custom_call.1} parent=1 // pred_check_branch
      %29 = sbr.rel (0) target = $region29
    $region28: #{tpu_custom_call.1} parent=1 // pred_region
      _
    $region29: #{tpu_custom_call.1} parent=1 // pred_fallthru
      _
    // Predicated region
    $region30: #{tpu_custom_call.1} parent=1 // pred_check
      _
    $region31: #{tpu_custom_call.1} parent=1 // pred_check_branch
      %31 = sbr.rel (0) target = $region33
    $region32: #{tpu_custom_call.1} parent=1 // pred_region
      _
    $region33: #{tpu_custom_call.1} parent=1 // pred_fallthru
      _
    // Predicated region
    $region34: #{tpu_custom_call.1} parent=1 // pred_check
      _
    $region35: #{tpu_custom_call.1} parent=1 // pred_check_branch
      %33 = sbr.rel (0) target = $region37
    $region36: #{tpu_custom_call.1} parent=1 // pred_region
      _
    $region37: #{tpu_custom_call.1} parent=1 // pred_fallthru
      _
    // Predicated region
    $region38: #{tpu_custom_call.1} parent=1 // pred_check
      _
    $region39: #{tpu_custom_call.1} parent=1 // pred_check_branch
      %35 = sbr.rel (0) target = $region41
    $region40: #{tpu_custom_call.1} parent=1 // pred_region
      _
    $region41: #{tpu_custom_call.1} parent=1 // pred_fallthru
      _
    %v36 = vld [vmem:[%s0] sm:$0xff]
    %v37 = vld [vmem:[%s0 + $0x8] sm:$0xff]
    %v38 = vld [vmem:[%s0 + $0x10] sm:$0xff]
    %v39 = vld [vmem:[%s0 + $0x18] sm:$0xff]
    %v40 = vld [vmem:[%s0 + $0x20] sm:$0xff]
    %v41 = vld [vmem:[%s0 + $0x28] sm:$0xff]
    %v42 = vld [vmem:[%s0 + $0x30] sm:$0xff]
    %v43 = vld [vmem:[%s0 + $0x38] sm:$0xff]
    %v44 = vld [vmem:[%s1] sm:$0xff]
    %v45 = vld [vmem:[%s3] sm:$0x1]
    %v47 = vlaneseq
    %v48 = vshrl.u32 %v47, 7
    %v49 = vsub.s32 0, %v48
    %v50 = vrot.slane %v45, %v49
    %vm52 = vcmask 64512
    %v54 = vsel %vm52, %v36, 0
    %v57 = vsel %vm52, %v37, 0
    %v60 = vsel %vm52, %v38, 0
    %v63 = vsel %vm52, %v39, 0
    %v66 = vsel %vm52, %v40, 0
    %v69 = vsel %vm52, %v41, 0
    %v72 = vsel %vm52, %v42, 0
    %v75 = vsel %vm52, %v43, 0
    %77 = vmatprep.subr.mxu0 0.0
    %78 = vmatpush1.msra.mxu0 0.0
    %79 = vmatprep.subr.mxu0 0.0
    %80 = vmatpush1.msra.mxu0 0.0
    %81 = vmatprep.subr.mxu0 0.0
    %82 = vmatpush1.msra.mxu0 0.0
    %83 = vmatprep.subr.mxu0 0.0
    %84 = vmatpush1.msra.mxu0 0.0
    %85 = vmatprep.subr.mxu0 0.0
    %86 = vmatpush1.msra.mxu0 0.0
    %87 = vmatprep.subr.mxu0 0.0
    %88 = vmatpush1.msra.mxu0 0.0
    %89 = vmatprep.subr.mxu0 0.0
    %90 = vmatpush1.msra.mxu0 0.0
    %91 = vmatprep.subr.mxu0 0.0
    %92 = vmatpush1.msra.mxu0 0.0
    %93 = vmatprep.subr.mxu0 0.0
    %94 = vmatpush1.msra.mxu0 0.0
    %95 = vmatprep.subr.mxu0 0.0
    %96 = vmatpush1.msra.mxu0 0.0
    %97 = vmatprep.subr.mxu0 0.0
    %98 = vmatpush1.msra.mxu0 0.0
    %99 = vmatprep.subr.mxu0 0.0
    %100 = vmatpush1.msra.mxu0 0.0
    %101 = vmatprep.subr.mxu0 0.0
    %102 = vmatpush1.msra.mxu0 0.0
    %103 = vmatprep.subr.mxu0 0.0
    %104 = vmatpush1.msra.mxu0 0.0
    %105 = vmatprep.subr.mxu0 0.0
    %106 = vmatpush1.msra.mxu0 0.0
    %107 = vmatprep.subr.mxu0 0.0
    %108 = vmatpush1.msra.mxu0 %v44
    %109 = vmatprep.subr.mxu0 0.0
    %110 = vmatpush2.msra.mxu0 0.0
    %111 = vmatprep.subr.mxu0 0.0
    %112 = vmatpush2.msra.mxu0 0.0
    %113 = vmatprep.subr.mxu0 0.0
    %114 = vmatpush2.msra.mxu0 0.0
    %115 = vmatprep.subr.mxu0 0.0
    %116 = vmatpush2.msra.mxu0 0.0
    %117 = vmatprep.subr.mxu0 0.0
    %118 = vmatpush2.msra.mxu0 0.0
    %119 = vmatprep.subr.mxu0 0.0
    %120 = vmatpush2.msra.mxu0 0.0
    %121 = vmatprep.subr.mxu0 0.0
    %122 = vmatpush2.msra.mxu0 0.0
    %123 = vmatprep.subr.mxu0 0.0
    %124 = vmatpush2.msra.mxu0 0.0
    %125 = vmatprep.subr.mxu0 0.0
    %126 = vmatpush2.msra.mxu0 0.0
    %127 = vmatprep.subr.mxu0 0.0
    %128 = vmatpush2.msra.mxu0 0.0
    %129 = vmatprep.subr.mxu0 0.0
    %130 = vmatpush2.msra.mxu0 0.0
    %131 = vmatprep.subr.mxu0 0.0
    %132 = vmatpush2.msra.mxu0 0.0
    %133 = vmatprep.subr.mxu0 0.0
    %134 = vmatpush2.msra.mxu0 0.0
    %135 = vmatprep.subr.mxu0 0.0
    %136 = vmatpush2.msra.mxu0 0.0
    %137 = vmatprep.subr.mxu0 0.0
    %138 = vmatpush2.msra.mxu0 0.0
    %139 = vmatprep.subr.mxu0 0.0
    %140 = vmatpush2.msra.mxu0 0.0
    %141 = vmatprep.mubr.f32.mxu0 0.0
    %142 = vmatmul.mubr.f32.gmra.mxu0 %v54
    %v143 = vpop.f32.mrf.mxu0
    %v144 = vadd.f32 %v50, %v143
    %v145 = vpop.f32.mrf.mxu0
    %146 = vmatprep.mubr.f32.mxu0 0.0
    %147 = vmatmul.mubr.f32.gmra.mxu0 %v57
    %v148 = vpop.f32.mrf.mxu0
    %v149 = vadd.f32 %v50, %v148
    %v150 = vpop.f32.mrf.mxu0
    %151 = vmatprep.mubr.f32.mxu0 0.0
    %152 = vmatmul.mubr.f32.gmra.mxu0 %v60
    %v153 = vpop.f32.mrf.mxu0
    %v154 = vadd.f32 %v50, %v153
    %v155 = vpop.f32.mrf.mxu0
    %156 = vmatprep.mubr.f32.mxu0 0.0
    %157 = vmatmul.mubr.f32.gmra.mxu0 %v63
    %v158 = vpop.f32.mrf.mxu0
    %v159 = vadd.f32 %v50, %v158
    %v160 = vpop.f32.mrf.mxu0
    %161 = vmatprep.mubr.f32.mxu0 0.0
    %162 = vmatmul.mubr.f32.gmra.mxu0 %v66
    %v163 = vpop.f32.mrf.mxu0
    %v164 = vadd.f32 %v50, %v163
    %v165 = vpop.f32.mrf.mxu0
    %166 = vmatprep.mubr.f32.mxu0 0.0
    %167 = vmatmul.mubr.f32.gmra.mxu0 %v69
    %v168 = vpop.f32.mrf.mxu0
    %v169 = vadd.f32 %v50, %v168
    %v170 = vpop.f32.mrf.mxu0
    %171 = vmatprep.mubr.f32.mxu0 0.0
    %172 = vmatmul.mubr.f32.gmra.mxu0 %v72
    %v173 = vpop.f32.mrf.mxu0
    %v174 = vadd.f32 %v50, %v173
    %v175 = vpop.f32.mrf.mxu0
    %176 = vmatprep.mubr.f32.mxu0 0.0
    %177 = vmatmul.mubr.f32.gmra.mxu0 %v75
    %v178 = vpop.f32.mrf.mxu0
    %v179 = vadd.f32 %v50, %v178
    %v180 = vpop.f32.mrf.mxu0
    %181 = vdwg.mxu0
    %v182 = vld [vmem:[%s2] sm:$0xff]
    %v183 = vld [vmem:[%s2 + $0x8] sm:$0xff]
    %v184 = vld [vmem:[%s2 + $0x10] sm:$0xff]
    %v185 = vld [vmem:[%s2 + $0x18] sm:$0xff]
    %v186 = vld [vmem:[%s4] sm:$0xff]
    %v187 = vld [vmem:[%s4 + $0x8] sm:$0xff]
    %v188 = vld [vmem:[%s4 + $0x10] sm:$0xff]
    %v189 = vld [vmem:[%s4 + $0x18] sm:$0xff]
    %v190 = vld [vmem:[%s4 + $0x20] sm:$0xff]
    %v191 = vld [vmem:[%s4 + $0x28] sm:$0xff]
    %v192 = vld [vmem:[%s4 + $0x30] sm:$0xff]
    %v193 = vld [vmem:[%s4 + $0x38] sm:$0xff]
    %v194 = vld [vmem:[%s5] sm:$0x1]
    %v196 = vlaneseq
    %v197 = vshrl.u32 %v196, 7
    %v198 = vsub.s32 0, %v197
    %v199 = vrot.slane %v194, %v198
    %vm201 = vcmask 261120
    %v203 = vsel %vm201, 0.0, 0
    %205 = vmatprep.subr.mxu0 0.0
    %206 = vmatpush1.msra.mxu0 0.0
    %207 = vmatprep.subr.mxu0 0.0
    %208 = vmatpush1.msra.mxu0 0.0
    %209 = vmatprep.subr.mxu0 0.0
    %210 = vmatpush1.msra.mxu0 0.0
    %211 = vmatprep.subr.mxu0 0.0
    %212 = vmatpush1.msra.mxu0 0.0
    %213 = vmatprep.subr.mxu0 0.0
    %214 = vmatpush1.msra.mxu0 0.0
    %215 = vmatprep.subr.mxu0 0.0
    %216 = vmatpush1.msra.mxu0 0.0
    %217 = vmatprep.subr.mxu0 0.0
    %218 = vmatpush1.msra.mxu0 0.0
    %219 = vmatprep.subr.mxu0 0.0
    %220 = vmatpush1.msra.mxu0 0.0
    %221 = vmatprep.subr.mxu0 0.0
    %222 = vmatpush1.msra.mxu0 0.0
    %223 = vmatprep.subr.mxu0 0.0
    %224 = vmatpush1.msra.mxu0 0.0
    %225 = vmatprep.subr.mxu0 0.0
    %226 = vmatpush1.msra.mxu0 0.0
    %227 = vmatprep.subr.mxu0 0.0
    %228 = vmatpush1.msra.mxu0 0.0
    %229 = vmatprep.subr.mxu0 0.0
    %230 = vmatpush1.msra.mxu0 %v185
    %231 = vmatprep.subr.mxu0 0.0
    %232 = vmatpush1.msra.mxu0 %v184
    %233 = vmatprep.subr.mxu0 0.0
    %234 = vmatpush1.msra.mxu0 %v183
    %235 = vmatprep.subr.mxu0 0.0
    %236 = vmatpush1.msra.mxu0 %v182
    %237 = vmatprep.subr.mxu0 0.0
    %238 = vmatpush2.msra.mxu0 0.0
    %239 = vmatprep.subr.mxu0 0.0
    %240 = vmatpush2.msra.mxu0 0.0
    %241 = vmatprep.subr.mxu0 0.0
    %242 = vmatpush2.msra.mxu0 0.0
    %243 = vmatprep.subr.mxu0 0.0
    %244 = vmatpush2.msra.mxu0 0.0
    %245 = vmatprep.subr.mxu0 0.0
    %246 = vmatpush2.msra.mxu0 0.0
    %247 = vmatprep.subr.mxu0 0.0
    %248 = vmatpush2.msra.mxu0 0.0
    %249 = vmatprep.subr.mxu0 0.0
    %250 = vmatpush2.msra.mxu0 0.0
    %251 = vmatprep.subr.mxu0 0.0
    %252 = vmatpush2.msra.mxu0 0.0
    %253 = vmatprep.subr.mxu0 0.0
    %254 = vmatpush2.msra.mxu0 0.0
    %255 = vmatprep.subr.mxu0 0.0
    %256 = vmatpush2.msra.mxu0 0.0
    %257 = vmatprep.subr.mxu0 0.0
    %258 = vmatpush2.msra.mxu0 0.0
    %259 = vmatprep.subr.mxu0 0.0
    %260 = vmatpush2.msra.mxu0 0.0
    %261 = vmatprep.subr.mxu0 0.0
    %262 = vmatpush2.msra.mxu0 0.0
    %263 = vmatprep.subr.mxu0 0.0
    %264 = vmatpush2.msra.mxu0 0.0
    %265 = vmatprep.subr.mxu0 0.0
    %266 = vmatpush2.msra.mxu0 0.0
    %267 = vmatprep.subr.mxu0 0.0
    %268 = vmatpush2.msra.mxu0 0.0
    %269 = vmatprep.mubr.f32.mxu0 0.0
    %270 = vmatmul.mubr.f32.gmra.mxu0 %v203
    %v271 = vpop.f32.mrf.mxu0
    %v272 = vadd.f32 0.0, %v271
    %v273 = vpop.f32.mrf.mxu0
    %274 = vdwg.mxu0
    %v275 = vadd.f32 %v144, %v272
    %v276 = vxor.u32 %v275, 2147483648
    %v277 = vmul.f32 %v276, 1.442695
    %v278 = vpow.pop %v277
    %v279 = vadd.f32 %v278, 1.0
    %v280 = vrcp.pop %v279
    %v281 = vmul.f32 1.0, %v280
    %v282 = vtanh.pop %v275
    %v283 = vmul.f32 %v281, 0.0
    %285 = vrot.lane.b32.xlu0 %v282, 64
    %v286 = vpop.permute.xlu0 %285
    %v288 = vmul.f32 %v281, %v286
    %290 = vrot.lane.b32.xlu0 %v288, 32
    %v291 = vpop.permute.xlu0 %290
    %v293 = vadd.f32 %v283, %v291
    %v294 = vtanh.pop %v293
    %296 = vrot.lane.b32.xlu0 %v294, 64
    %v297 = vpop.permute.xlu0 %296
    %v299 = vmul.f32 %v281, %v297
    %301 = vrot.lane.b32.xlu0 %v299, 32
    %v302 = vpop.permute.xlu0 %301
    %v304 = vsel %vm201, %v302, 0.0
    %vm305 = vcmask 523264
    %v307 = vsel %vm305, %v304, 0
    %309 = vmatprep.subr.mxu0 0.0
    %310 = vmatpush1.msra.mxu0 0.0
    %311 = vmatprep.subr.mxu0 0.0
    %312 = vmatpush1.msra.mxu0 0.0
    %313 = vmatprep.subr.mxu0 0.0
    %314 = vmatpush1.msra.mxu0 0.0
    %315 = vmatprep.subr.mxu0 0.0
    %316 = vmatpush1.msra.mxu0 0.0
    %317 = vmatprep.subr.mxu0 0.0
    %318 = vmatpush1.msra.mxu0 0.0
    %319 = vmatprep.subr.mxu0 0.0
    %320 = vmatpush1.msra.mxu0 0.0
    %321 = vmatprep.subr.mxu0 0.0
    %322 = vmatpush1.msra.mxu0 0.0
    %323 = vmatprep.subr.mxu0 0.0
    %324 = vmatpush1.msra.mxu0 0.0
    %325 = vmatprep.subr.mxu0 0.0
    %326 = vmatpush1.msra.mxu0 %v193
    %327 = vmatprep.subr.mxu0 0.0
    %328 = vmatpush1.msra.mxu0 %v192
    %329 = vmatprep.subr.mxu0 0.0
    %330 = vmatpush1.msra.mxu0 %v191
    %331 = vmatprep.subr.mxu0 0.0
    %332 = vmatpush1.msra.mxu0 %v190
    %333 = vmatprep.subr.mxu0 0.0
    %334 = vmatpush1.msra.mxu0 %v189
    %335 = vmatprep.subr.mxu0 0.0
    %336 = vmatpush1.msra.mxu0 %v188
    %337 = vmatprep.subr.mxu0 0.0
    %338 = vmatpush1.msra.mxu0 %v187
    %339 = vmatprep.subr.mxu0 0.0
    %340 = vmatpush1.msra.mxu0 %v186
    %341 = vmatprep.subr.mxu0 0.0
    %342 = vmatpush2.msra.mxu0 0.0
    %343 = vmatprep.subr.mxu0 0.0
    %344 = vmatpush2.msra.mxu0 0.0
    %345 = vmatprep.subr.mxu0 0.0
    %346 = vmatpush2.msra.mxu0 0.0
    %347 = vmatprep.subr.mxu0 0.0
    %348 = vmatpush2.msra.mxu0 0.0
    %349 = vmatprep.subr.mxu0 0.0
    %350 = vmatpush2.msra.mxu0 0.0
    %351 = vmatprep.subr.mxu0 0.0
    %352 = vmatpush2.msra.mxu0 0.0
    %353 = vmatprep.subr.mxu0 0.0
    %354 = vmatpush2.msra.mxu0 0.0
    %355 = vmatprep.subr.mxu0 0.0
    %356 = vmatpush2.msra.mxu0 0.0
    %357 = vmatprep.subr.mxu0 0.0
    %358 = vmatpush2.msra.mxu0 0.0
    %359 = vmatprep.subr.mxu0 0.0
    %360 = vmatpush2.msra.mxu0 0.0
    %361 = vmatprep.subr.mxu0 0.0
    %362 = vmatpush2.msra.mxu0 0.0
    %363 = vmatprep.subr.mxu0 0.0
    %364 = vmatpush2.msra.mxu0 0.0
    %365 = vmatprep.subr.mxu0 0.0
    %366 = vmatpush2.msra.mxu0 0.0
    %367 = vmatprep.subr.mxu0 0.0
    %368 = vmatpush2.msra.mxu0 0.0
    %369 = vmatprep.subr.mxu0 0.0
    %370 = vmatpush2.msra.mxu0 0.0
    %371 = vmatprep.subr.mxu0 0.0
    %372 = vmatpush2.msra.mxu0 0.0
    %373 = vmatprep.mubr.f32.mxu0 0.0
    %374 = vmatmul.mubr.f32.gmra.mxu0 %v307
    %v375 = vpop.f32.mrf.mxu0
    %v376 = vadd.f32 %v199, %v375
    %v377 = vpop.f32.mrf.mxu0
    %378 = vdwg.mxu0
    %v379 = vxor.u32 %v376, 2147483648
    %v380 = vmul.f32 %v379, 1.442695
    %v381 = vpow.pop %v380
    %v382 = vadd.f32 %v381, 1.0
    %v383 = vrcp.pop %v382
    %v384 = vmul.f32 1.0, %v383
    %v385 = vtanh.pop %v376
    %v386 = vmul.f32 %v384, 0.0
    %388 = vrot.lane.b32.xlu0 %v385, 64
    %v389 = vpop.permute.xlu0 %388
    %v391 = vmul.f32 %v384, %v389
    %393 = vrot.lane.b32.xlu0 %v391, 32
    %v394 = vpop.permute.xlu0 %393
    %v396 = vadd.f32 %v386, %v394
    %v397 = vtanh.pop %v396
    %399 = vrot.lane.b32.xlu0 %v397, 64
    %v400 = vpop.permute.xlu0 %399
    %v402 = vmul.f32 %v384, %v400
    %v403 = vsel %vm201, %v302, 0
    %405 = vmatprep.subr.mxu0 0.0
    %406 = vmatpush1.msra.mxu0 0.0
    %407 = vmatprep.subr.mxu0 0.0
    %408 = vmatpush1.msra.mxu0 0.0
    %409 = vmatprep.subr.mxu0 0.0
    %410 = vmatpush1.msra.mxu0 0.0
    %411 = vmatprep.subr.mxu0 0.0
    %412 = vmatpush1.msra.mxu0 0.0
    %413 = vmatprep.subr.mxu0 0.0
    %414 = vmatpush1.msra.mxu0 0.0
    %415 = vmatprep.subr.mxu0 0.0
    %416 = vmatpush1.msra.mxu0 0.0
    %417 = vmatprep.subr.mxu0 0.0
    %418 = vmatpush1.msra.mxu0 0.0
    %419 = vmatprep.subr.mxu0 0.0
    %420 = vmatpush1.msra.mxu0 0.0
    %421 = vmatprep.subr.mxu0 0.0
    %422 = vmatpush1.msra.mxu0 0.0
    %423 = vmatprep.subr.mxu0 0.0
    %424 = vmatpush1.msra.mxu0 0.0
    %425 = vmatprep.subr.mxu0 0.0
    %426 = vmatpush1.msra.mxu0 0.0
    %427 = vmatprep.subr.mxu0 0.0
    %428 = vmatpush1.msra.mxu0 0.0
    %429 = vmatprep.subr.mxu0 0.0
    %430 = vmatpush1.msra.mxu0 %v185
    %431 = vmatprep.subr.mxu0 0.0
    %432 = vmatpush1.msra.mxu0 %v184
    %433 = vmatprep.subr.mxu0 0.0
    %434 = vmatpush1.msra.mxu0 %v183
    %435 = vmatprep.subr.mxu0 0.0
    %436 = vmatpush1.msra.mxu0 %v182
    %437 = vmatprep.subr.mxu0 0.0
    %438 = vmatpush2.msra.mxu0 0.0
    %439 = vmatprep.subr.mxu0 0.0
    %440 = vmatpush2.msra.mxu0 0.0
    %441 = vmatprep.subr.mxu0 0.0
    %442 = vmatpush2.msra.mxu0 0.0
    %443 = vmatprep.subr.mxu0 0.0
    %444 = vmatpush2.msra.mxu0 0.0
    %445 = vmatprep.subr.mxu0 0.0
    %446 = vmatpush2.msra.mxu0 0.0
    %447 = vmatprep.subr.mxu0 0.0
    %448 = vmatpush2.msra.mxu0 0.0
    %449 = vmatprep.subr.mxu0 0.0
    %450 = vmatpush2.msra.mxu0 0.0
    %451 = vmatprep.subr.mxu0 0.0
    %452 = vmatpush2.msra.mxu0 0.0
    %453 = vmatprep.subr.mxu0 0.0
    %454 = vmatpush2.msra.mxu0 0.0
    %455 = vmatprep.subr.mxu0 0.0
    %456 = vmatpush2.msra.mxu0 0.0
    %457 = vmatprep.subr.mxu0 0.0
    %458 = vmatpush2.msra.mxu0 0.0
    %459 = vmatprep.subr.mxu0 0.0
    %460 = vmatpush2.msra.mxu0 0.0
    %461 = vmatprep.subr.mxu0 0.0
    %462 = vmatpush2.msra.mxu0 0.0
    %463 = vmatprep.subr.mxu0 0.0
    %464 = vmatpush2.msra.mxu0 0.0
    %465 = vmatprep.subr.mxu0 0.0
    %466 = vmatpush2.msra.mxu0 0.0
    %467 = vmatprep.subr.mxu0 0.0
    %468 = vmatpush2.msra.mxu0 0.0
    %469 = vmatprep.mubr.f32.mxu0 0.0
    %470 = vmatmul.mubr.f32.gmra.mxu0 %v403
    %v471 = vpop.f32.mrf.mxu0
    %v472 = vadd.f32 0.0, %v471
    %v473 = vpop.f32.mrf.mxu0
    %474 = vdwg.mxu0
    %v475 = vadd.f32 %v149, %v472
    %v476 = vxor.u32 %v475, 2147483648
    %v477 = vmul.f32 %v476, 1.442695
    %v478 = vpow.pop %v477
    %v479 = vadd.f32 %v478, 1.0
    %v480 = vrcp.pop %v479
    %v481 = vmul.f32 1.0, %v480
    %v482 = vtanh.pop %v475
    %v483 = vmul.f32 %v481, %v293
    %485 = vrot.lane.b32.xlu0 %v482, 64
    %v486 = vpop.permute.xlu0 %485
    %v488 = vmul.f32 %v481, %v486
    %490 = vrot.lane.b32.xlu0 %v488, 32
    %v491 = vpop.permute.xlu0 %490
    %v493 = vadd.f32 %v483, %v491
    %v494 = vtanh.pop %v493
    %496 = vrot.lane.b32.xlu0 %v494, 64
    %v497 = vpop.permute.xlu0 %496
    %v499 = vmul.f32 %v481, %v497
    %501 = vrot.lane.b32.xlu0 %v499, 32
    %v502 = vpop.permute.xlu0 %501
    %505 = vrot.lane.b32.xlu0 %v402, 64
    %v506 = vpop.permute.xlu0 %505
    %v508 = vsel %vm201, %v502, %v506
    %v510 = vsel %vm305, %v508, 0
    %512 = vmatprep.subr.mxu0 0.0
    %513 = vmatpush1.msra.mxu0 0.0
    %514 = vmatprep.subr.mxu0 0.0
    %515 = vmatpush1.msra.mxu0 0.0
    %516 = vmatprep.subr.mxu0 0.0
    %517 = vmatpush1.msra.mxu0 0.0
    %518 = vmatprep.subr.mxu0 0.0
    %519 = vmatpush1.msra.mxu0 0.0
    %520 = vmatprep.subr.mxu0 0.0
    %521 = vmatpush1.msra.mxu0 0.0
    %522 = vmatprep.subr.mxu0 0.0
    %523 = vmatpush1.msra.mxu0 0.0
    %524 = vmatprep.subr.mxu0 0.0
    %525 = vmatpush1.msra.mxu0 0.0
    %526 = vmatprep.subr.mxu0 0.0
    %527 = vmatpush1.msra.mxu0 0.0
    %528 = vmatprep.subr.mxu0 0.0
    %529 = vmatpush1.msra.mxu0 %v193
    %530 = vmatprep.subr.mxu0 0.0
    %531 = vmatpush1.msra.mxu0 %v192
    %532 = vmatprep.subr.mxu0 0.0
    %533 = vmatpush1.msra.mxu0 %v191
    %534 = vmatprep.subr.mxu0 0.0
    %535 = vmatpush1.msra.mxu0 %v190
    %536 = vmatprep.subr.mxu0 0.0
    %537 = vmatpush1.msra.mxu0 %v189
    %538 = vmatprep.subr.mxu0 0.0
    %539 = vmatpush1.msra.mxu0 %v188
    %540 = vmatprep.subr.mxu0 0.0
    %541 = vmatpush1.msra.mxu0 %v187
    %542 = vmatprep.subr.mxu0 0.0
    %543 = vmatpush1.msra.mxu0 %v186
    %544 = vmatprep.subr.mxu0 0.0
    %545 = vmatpush2.msra.mxu0 0.0
    %546 = vmatprep.subr.mxu0 0.0
    %547 = vmatpush2.msra.mxu0 0.0
    %548 = vmatprep.subr.mxu0 0.0
    %549 = vmatpush2.msra.mxu0 0.0
    %550 = vmatprep.subr.mxu0 0.0
    %551 = vmatpush2.msra.mxu0 0.0
    %552 = vmatprep.subr.mxu0 0.0
    %553 = vmatpush2.msra.mxu0 0.0
    %554 = vmatprep.subr.mxu0 0.0
    %555 = vmatpush2.msra.mxu0 0.0
    %556 = vmatprep.subr.mxu0 0.0
    %557 = vmatpush2.msra.mxu0 0.0
    %558 = vmatprep.subr.mxu0 0.0
    %559 = vmatpush2.msra.mxu0 0.0
    %560 = vmatprep.subr.mxu0 0.0
    %561 = vmatpush2.msra.mxu0 0.0
    %562 = vmatprep.subr.mxu0 0.0
    %563 = vmatpush2.msra.mxu0 0.0
    %564 = vmatprep.subr.mxu0 0.0
    %565 = vmatpush2.msra.mxu0 0.0
    %566 = vmatprep.subr.mxu0 0.0
    %567 = vmatpush2.msra.mxu0 0.0
    %568 = vmatprep.subr.mxu0 0.0
    %569 = vmatpush2.msra.mxu0 0.0
    %570 = vmatprep.subr.mxu0 0.0
    %571 = vmatpush2.msra.mxu0 0.0
    %572 = vmatprep.subr.mxu0 0.0
    %573 = vmatpush2.msra.mxu0 0.0
    %574 = vmatprep.subr.mxu0 0.0
    %575 = vmatpush2.msra.mxu0 0.0
    %576 = vmatprep.mubr.f32.mxu0 0.0
    %577 = vmatmul.mubr.f32.gmra.mxu0 %v510
    %v578 = vpop.f32.mrf.mxu0
    %v579 = vadd.f32 %v199, %v578
    %v580 = vpop.f32.mrf.mxu0
    %581 = vdwg.mxu0
    %v582 = vxor.u32 %v579, 2147483648
    %v583 = vmul.f32 %v582, 1.442695
    %v584 = vpow.pop %v583
    %v585 = vadd.f32 %v584, 1.0
    %v586 = vrcp.pop %v585
    %v587 = vmul.f32 1.0, %v586
    %v588 = vtanh.pop %v579
    %v589 = vmul.f32 %v587, %v396
    %591 = vrot.lane.b32.xlu0 %v588, 64
    %v592 = vpop.permute.xlu0 %591
    %v594 = vmul.f32 %v587, %v592
    %596 = vrot.lane.b32.xlu0 %v594, 32
    %v597 = vpop.permute.xlu0 %596
    %v599 = vadd.f32 %v589, %v597
    %v600 = vtanh.pop %v599
    %602 = vrot.lane.b32.xlu0 %v600, 64
    %v603 = vpop.permute.xlu0 %602
    %v605 = vmul.f32 %v587, %v603
    %v606 = vsel %vm201, %v502, 0
    %608 = vmatprep.subr.mxu0 0.0
    %609 = vmatpush1.msra.mxu0 0.0
    %610 = vmatprep.subr.mxu0 0.0
    %611 = vmatpush1.msra.mxu0 0.0
    %612 = vmatprep.subr.mxu0 0.0
    %613 = vmatpush1.msra.mxu0 0.0
    %614 = vmatprep.subr.mxu0 0.0
    %615 = vmatpush1.msra.mxu0 0.0
    %616 = vmatprep.subr.mxu0 0.0
    %617 = vmatpush1.msra.mxu0 0.0
    %618 = vmatprep.subr.mxu0 0.0
    %619 = vmatpush1.msra.mxu0 0.0
    %620 = vmatprep.subr.mxu0 0.0
    %621 = vmatpush1.msra.mxu0 0.0
    %622 = vmatprep.subr.mxu0 0.0
    %623 = vmatpush1.msra.mxu0 0.0
    %624 = vmatprep.subr.mxu0 0.0
    %625 = vmatpush1.msra.mxu0 0.0
    %626 = vmatprep.subr.mxu0 0.0
    %627 = vmatpush1.msra.mxu0 0.0
    %628 = vmatprep.subr.mxu0 0.0
    %629 = vmatpush1.msra.mxu0 0.0
    %630 = vmatprep.subr.mxu0 0.0
    %631 = vmatpush1.msra.mxu0 0.0
    %632 = vmatprep.subr.mxu0 0.0
    %633 = vmatpush1.msra.mxu0 %v185
    %634 = vmatprep.subr.mxu0 0.0
    %635 = vmatpush1.msra.mxu0 %v184
    %636 = vmatprep.subr.mxu0 0.0
    %637 = vmatpush1.msra.mxu0 %v183
    %638 = vmatprep.subr.mxu0 0.0
    %639 = vmatpush1.msra.mxu0 %v182
    %640 = vmatprep.subr.mxu0 0.0
    %641 = vmatpush2.msra.mxu0 0.0
    %642 = vmatprep.subr.mxu0 0.0
    %643 = vmatpush2.msra.mxu0 0.0
    %644 = vmatprep.subr.mxu0 0.0
    %645 = vmatpush2.msra.mxu0 0.0
    %646 = vmatprep.subr.mxu0 0.0
    %647 = vmatpush2.msra.mxu0 0.0
    %648 = vmatprep.subr.mxu0 0.0
    %649 = vmatpush2.msra.mxu0 0.0
    %650 = vmatprep.subr.mxu0 0.0
    %651 = vmatpush2.msra.mxu0 0.0
    %652 = vmatprep.subr.mxu0 0.0
    %653 = vmatpush2.msra.mxu0 0.0
    %654 = vmatprep.subr.mxu0 0.0
    %655 = vmatpush2.msra.mxu0 0.0
    %656 = vmatprep.subr.mxu0 0.0
    %657 = vmatpush2.msra.mxu0 0.0
    %658 = vmatprep.subr.mxu0 0.0
    %659 = vmatpush2.msra.mxu0 0.0
    %660 = vmatprep.subr.mxu0 0.0
    %661 = vmatpush2.msra.mxu0 0.0
    %662 = vmatprep.subr.mxu0 0.0
    %663 = vmatpush2.msra.mxu0 0.0
    %664 = vmatprep.subr.mxu0 0.0
    %665 = vmatpush2.msra.mxu0 0.0
    %666 = vmatprep.subr.mxu0 0.0
    %667 = vmatpush2.msra.mxu0 0.0
    %668 = vmatprep.subr.mxu0 0.0
    %669 = vmatpush2.msra.mxu0 0.0
    %670 = vmatprep.subr.mxu0 0.0
    %671 = vmatpush2.msra.mxu0 0.0
    %672 = vmatprep.mubr.f32.mxu0 0.0
    %673 = vmatmul.mubr.f32.gmra.mxu0 %v606
    %v674 = vpop.f32.mrf.mxu0
    %v675 = vadd.f32 0.0, %v674
    %v676 = vpop.f32.mrf.mxu0
    %677 = vdwg.mxu0
    %v678 = vadd.f32 %v154, %v675
    %v679 = vxor.u32 %v678, 2147483648
    %v680 = vmul.f32 %v679, 1.442695
    %v681 = vpow.pop %v680
    %v682 = vadd.f32 %v681, 1.0
    %v683 = vrcp.pop %v682
    %v684 = vmul.f32 1.0, %v683
    %v685 = vtanh.pop %v678
    %v686 = vmul.f32 %v684, %v493
    %688 = vrot.lane.b32.xlu0 %v685, 64
    %v689 = vpop.permute.xlu0 %688
    %v691 = vmul.f32 %v684, %v689
    %693 = vrot.lane.b32.xlu0 %v691, 32
    %v694 = vpop.permute.xlu0 %693
    %v696 = vadd.f32 %v686, %v694
    %v697 = vtanh.pop %v696
    %699 = vrot.lane.b32.xlu0 %v697, 64
    %v700 = vpop.permute.xlu0 %699
    %v702 = vmul.f32 %v684, %v700
    %704 = vrot.lane.b32.xlu0 %v702, 32
    %v705 = vpop.permute.xlu0 %704
    %708 = vrot.lane.b32.xlu0 %v605, 64
    %v709 = vpop.permute.xlu0 %708
    %v711 = vsel %vm201, %v705, %v709
    %v713 = vsel %vm305, %v711, 0
    %715 = vmatprep.subr.mxu0 0.0
    %716 = vmatpush1.msra.mxu0 0.0
    %717 = vmatprep.subr.mxu0 0.0
    %718 = vmatpush1.msra.mxu0 0.0
    %719 = vmatprep.subr.mxu0 0.0
    %720 = vmatpush1.msra.mxu0 0.0
    %721 = vmatprep.subr.mxu0 0.0
    %722 = vmatpush1.msra.mxu0 0.0
    %723 = vmatprep.subr.mxu0 0.0
    %724 = vmatpush1.msra.mxu0 0.0
    %725 = vmatprep.subr.mxu0 0.0
    %726 = vmatpush1.msra.mxu0 0.0
    %727 = vmatprep.subr.mxu0 0.0
    %728 = vmatpush1.msra.mxu0 0.0
    %729 = vmatprep.subr.mxu0 0.0
    %730 = vmatpush1.msra.mxu0 0.0
    %731 = vmatprep.subr.mxu0 0.0
    %732 = vmatpush1.msra.mxu0 %v193
    %733 = vmatprep.subr.mxu0 0.0
    %734 = vmatpush1.msra.mxu0 %v192
    %735 = vmatprep.subr.mxu0 0.0
    %736 = vmatpush1.msra.mxu0 %v191
    %737 = vmatprep.subr.mxu0 0.0
    %738 = vmatpush1.msra.mxu0 %v190
    %739 = vmatprep.subr.mxu0 0.0
    %740 = vmatpush1.msra.mxu0 %v189
    %741 = vmatprep.subr.mxu0 0.0
    %742 = vmatpush1.msra.mxu0 %v188
    %743 = vmatprep.subr.mxu0 0.0
    %744 = vmatpush1.msra.mxu0 %v187
    %745 = vmatprep.subr.mxu0 0.0
    %746 = vmatpush1.msra.mxu0 %v186
    %747 = vmatprep.subr.mxu0 0.0
    %748 = vmatpush2.msra.mxu0 0.0
    %749 = vmatprep.subr.mxu0 0.0
    %750 = vmatpush2.msra.mxu0 0.0
    %751 = vmatprep.subr.mxu0 0.0
    %752 = vmatpush2.msra.mxu0 0.0
    %753 = vmatprep.subr.mxu0 0.0
    %754 = vmatpush2.msra.mxu0 0.0
    %755 = vmatprep.subr.mxu0 0.0
    %756 = vmatpush2.msra.mxu0 0.0
    %757 = vmatprep.subr.mxu0 0.0
    %758 = vmatpush2.msra.mxu0 0.0
    %759 = vmatprep.subr.mxu0 0.0
    %760 = vmatpush2.msra.mxu0 0.0
    %761 = vmatprep.subr.mxu0 0.0
    %762 = vmatpush2.msra.mxu0 0.0
    %763 = vmatprep.subr.mxu0 0.0
    %764 = vmatpush2.msra.mxu0 0.0
    %765 = vmatprep.subr.mxu0 0.0
    %766 = vmatpush2.msra.mxu0 0.0
    %767 = vmatprep.subr.mxu0 0.0
    %768 = vmatpush2.msra.mxu0 0.0
    %769 = vmatprep.subr.mxu0 0.0
    %770 = vmatpush2.msra.mxu0 0.0
    %771 = vmatprep.subr.mxu0 0.0
    %772 = vmatpush2.msra.mxu0 0.0
    %773 = vmatprep.subr.mxu0 0.0
    %774 = vmatpush2.msra.mxu0 0.0
    %775 = vmatprep.subr.mxu0 0.0
    %776 = vmatpush2.msra.mxu0 0.0
    %777 = vmatprep.subr.mxu0 0.0
    %778 = vmatpush2.msra.mxu0 0.0
    %779 = vmatprep.mubr.f32.mxu0 0.0
    %780 = vmatmul.mubr.f32.gmra.mxu0 %v713
    %v781 = vpop.f32.mrf.mxu0
    %v782 = vadd.f32 %v199, %v781
    %v783 = vpop.f32.mrf.mxu0
    %784 = vdwg.mxu0
    %v785 = vxor.u32 %v782, 2147483648
    %v786 = vmul.f32 %v785, 1.442695
    %v787 = vpow.pop %v786
    %v788 = vadd.f32 %v787, 1.0
    %v789 = vrcp.pop %v788
    %v790 = vmul.f32 1.0, %v789
    %v791 = vtanh.pop %v782
    %v792 = vmul.f32 %v790, %v599
    %794 = vrot.lane.b32.xlu0 %v791, 64
    %v795 = vpop.permute.xlu0 %794
    %v797 = vmul.f32 %v790, %v795
    %799 = vrot.lane.b32.xlu0 %v797, 32
    %v800 = vpop.permute.xlu0 %799
    %v802 = vadd.f32 %v792, %v800
    %v803 = vtanh.pop %v802
    %805 = vrot.lane.b32.xlu0 %v803, 64
    %v806 = vpop.permute.xlu0 %805
    %v808 = vmul.f32 %v790, %v806
    %v809 = vsel %vm201, %v705, 0
    %811 = vmatprep.subr.mxu0 0.0
    %812 = vmatpush1.msra.mxu0 0.0
    %813 = vmatprep.subr.mxu0 0.0
    %814 = vmatpush1.msra.mxu0 0.0
    %815 = vmatprep.subr.mxu0 0.0
    %816 = vmatpush1.msra.mxu0 0.0
    %817 = vmatprep.subr.mxu0 0.0
    %818 = vmatpush1.msra.mxu0 0.0
    %819 = vmatprep.subr.mxu0 0.0
    %820 = vmatpush1.msra.mxu0 0.0
    %821 = vmatprep.subr.mxu0 0.0
    %822 = vmatpush1.msra.mxu0 0.0
    %823 = vmatprep.subr.mxu0 0.0
    %824 = vmatpush1.msra.mxu0 0.0
    %825 = vmatprep.subr.mxu0 0.0
    %826 = vmatpush1.msra.mxu0 0.0
    %827 = vmatprep.subr.mxu0 0.0
    %828 = vmatpush1.msra.mxu0 0.0
    %829 = vmatprep.subr.mxu0 0.0
    %830 = vmatpush1.msra.mxu0 0.0
    %831 = vmatprep.subr.mxu0 0.0
    %832 = vmatpush1.msra.mxu0 0.0
    %833 = vmatprep.subr.mxu0 0.0
    %834 = vmatpush1.msra.mxu0 0.0
    %835 = vmatprep.subr.mxu0 0.0
    %836 = vmatpush1.msra.mxu0 %v185
    %837 = vmatprep.subr.mxu0 0.0
    %838 = vmatpush1.msra.mxu0 %v184
    %839 = vmatprep.subr.mxu0 0.0
    %840 = vmatpush1.msra.mxu0 %v183
    %841 = vmatprep.subr.mxu0 0.0
    %842 = vmatpush1.msra.mxu0 %v182
    %843 = vmatprep.subr.mxu0 0.0
    %844 = vmatpush2.msra.mxu0 0.0
    %845 = vmatprep.subr.mxu0 0.0
    %846 = vmatpush2.msra.mxu0 0.0
    %847 = vmatprep.subr.mxu0 0.0
    %848 = vmatpush2.msra.mxu0 0.0
    %849 = vmatprep.subr.mxu0 0.0
    %850 = vmatpush2.msra.mxu0 0.0
    %851 = vmatprep.subr.mxu0 0.0
    %852 = vmatpush2.msra.mxu0 0.0
    %853 = vmatprep.subr.mxu0 0.0
    %854 = vmatpush2.msra.mxu0 0.0
    %855 = vmatprep.subr.mxu0 0.0
    %856 = vmatpush2.msra.mxu0 0.0
    %857 = vmatprep.subr.mxu0 0.0
    %858 = vmatpush2.msra.mxu0 0.0
    %859 = vmatprep.subr.mxu0 0.0
    %860 = vmatpush2.msra.mxu0 0.0
    %861 = vmatprep.subr.mxu0 0.0
    %862 = vmatpush2.msra.mxu0 0.0
    %863 = vmatprep.subr.mxu0 0.0
    %864 = vmatpush2.msra.mxu0 0.0
    %865 = vmatprep.subr.mxu0 0.0
    %866 = vmatpush2.msra.mxu0 0.0
    %867 = vmatprep.subr.mxu0 0.0
    %868 = vmatpush2.msra.mxu0 0.0
    %869 = vmatprep.subr.mxu0 0.0
    %870 = vmatpush2.msra.mxu0 0.0
    %871 = vmatprep.subr.mxu0 0.0
    %872 = vmatpush2.msra.mxu0 0.0
    %873 = vmatprep.subr.mxu0 0.0
    %874 = vmatpush2.msra.mxu0 0.0
    %875 = vmatprep.mubr.f32.mxu0 0.0
    %876 = vmatmul.mubr.f32.gmra.mxu0 %v809
    %v877 = vpop.f32.mrf.mxu0
    %v878 = vadd.f32 0.0, %v877
    %v879 = vpop.f32.mrf.mxu0
    %880 = vdwg.mxu0
    %v881 = vadd.f32 %v159, %v878
    %v882 = vxor.u32 %v881, 2147483648
    %v883 = vmul.f32 %v882, 1.442695
    %v884 = vpow.pop %v883
    %v885 = vadd.f32 %v884, 1.0
    %v886 = vrcp.pop %v885
    %v887 = vmul.f32 1.0, %v886
    %v888 = vtanh.pop %v881
    %v889 = vmul.f32 %v887, %v696
    %891 = vrot.lane.b32.xlu0 %v888, 64
    %v892 = vpop.permute.xlu0 %891
    %v894 = vmul.f32 %v887, %v892
    %896 = vrot.lane.b32.xlu0 %v894, 32
    %v897 = vpop.permute.xlu0 %896
    %v899 = vadd.f32 %v889, %v897
    %v900 = vtanh.pop %v899
    %902 = vrot.lane.b32.xlu0 %v900, 64
    %v903 = vpop.permute.xlu0 %902
    %v905 = vmul.f32 %v887, %v903
    %907 = vrot.lane.b32.xlu0 %v905, 32
    %v908 = vpop.permute.xlu0 %907
    %911 = vrot.lane.b32.xlu0 %v808, 64
    %v912 = vpop.permute.xlu0 %911
    %v914 = vsel %vm201, %v908, %v912
    %v916 = vsel %vm305, %v914, 0
    %918 = vmatprep.subr.mxu0 0.0
    %919 = vmatpush1.msra.mxu0 0.0
    %920 = vmatprep.subr.mxu0 0.0
    %921 = vmatpush1.msra.mxu0 0.0
    %922 = vmatprep.subr.mxu0 0.0
    %923 = vmatpush1.msra.mxu0 0.0
    %924 = vmatprep.subr.mxu0 0.0
    %925 = vmatpush1.msra.mxu0 0.0
    %926 = vmatprep.subr.mxu0 0.0
    %927 = vmatpush1.msra.mxu0 0.0
    %928 = vmatprep.subr.mxu0 0.0
    %929 = vmatpush1.msra.mxu0 0.0
    %930 = vmatprep.subr.mxu0 0.0
    %931 = vmatpush1.msra.mxu0 0.0
    %932 = vmatprep.subr.mxu0 0.0
    %933 = vmatpush1.msra.mxu0 0.0
    %934 = vmatprep.subr.mxu0 0.0
    %935 = vmatpush1.msra.mxu0 %v193
    %936 = vmatprep.subr.mxu0 0.0
    %937 = vmatpush1.msra.mxu0 %v192
    %938 = vmatprep.subr.mxu0 0.0
    %939 = vmatpush1.msra.mxu0 %v191
    %940 = vmatprep.subr.mxu0 0.0
    %941 = vmatpush1.msra.mxu0 %v190
    %942 = vmatprep.subr.mxu0 0.0
    %943 = vmatpush1.msra.mxu0 %v189
    %944 = vmatprep.subr.mxu0 0.0
    %945 = vmatpush1.msra.mxu0 %v188
    %946 = vmatprep.subr.mxu0 0.0
    %947 = vmatpush1.msra.mxu0 %v187
    %948 = vmatprep.subr.mxu0 0.0
    %949 = vmatpush1.msra.mxu0 %v186
    %950 = vmatprep.subr.mxu0 0.0
    %951 = vmatpush2.msra.mxu0 0.0
    %952 = vmatprep.subr.mxu0 0.0
    %953 = vmatpush2.msra.mxu0 0.0
    %954 = vmatprep.subr.mxu0 0.0
    %955 = vmatpush2.msra.mxu0 0.0
    %956 = vmatprep.subr.mxu0 0.0
    %957 = vmatpush2.msra.mxu0 0.0
    %958 = vmatprep.subr.mxu0 0.0
    %959 = vmatpush2.msra.mxu0 0.0
    %960 = vmatprep.subr.mxu0 0.0
    %961 = vmatpush2.msra.mxu0 0.0
    %962 = vmatprep.subr.mxu0 0.0
    %963 = vmatpush2.msra.mxu0 0.0
    %964 = vmatprep.subr.mxu0 0.0
    %965 = vmatpush2.msra.mxu0 0.0
    %966 = vmatprep.subr.mxu0 0.0
    %967 = vmatpush2.msra.mxu0 0.0
    %968 = vmatprep.subr.mxu0 0.0
    %969 = vmatpush2.msra.mxu0 0.0
    %970 = vmatprep.subr.mxu0 0.0
    %971 = vmatpush2.msra.mxu0 0.0
    %972 = vmatprep.subr.mxu0 0.0
    %973 = vmatpush2.msra.mxu0 0.0
    %974 = vmatprep.subr.mxu0 0.0
    %975 = vmatpush2.msra.mxu0 0.0
    %976 = vmatprep.subr.mxu0 0.0
    %977 = vmatpush2.msra.mxu0 0.0
    %978 = vmatprep.subr.mxu0 0.0
    %979 = vmatpush2.msra.mxu0 0.0
    %980 = vmatprep.subr.mxu0 0.0
    %981 = vmatpush2.msra.mxu0 0.0
    %982 = vmatprep.mubr.f32.mxu0 0.0
    %983 = vmatmul.mubr.f32.gmra.mxu0 %v916
    %v984 = vpop.f32.mrf.mxu0
    %v985 = vadd.f32 %v199, %v984
    %v986 = vpop.f32.mrf.mxu0
    %987 = vdwg.mxu0
    %v988 = vxor.u32 %v985, 2147483648
    %v989 = vmul.f32 %v988, 1.442695
    %v990 = vpow.pop %v989
    %v991 = vadd.f32 %v990, 1.0
    %v992 = vrcp.pop %v991
    %v993 = vmul.f32 1.0, %v992
    %v994 = vtanh.pop %v985
    %v995 = vmul.f32 %v993, %v802
    %997 = vrot.lane.b32.xlu0 %v994, 64
    %v998 = vpop.permute.xlu0 %997
    %v1000 = vmul.f32 %v993, %v998
    %1002 = vrot.lane.b32.xlu0 %v1000, 32
    %v1003 = vpop.permute.xlu0 %1002
    %v1005 = vadd.f32 %v995, %v1003
    %v1006 = vtanh.pop %v1005
    %1008 = vrot.lane.b32.xlu0 %v1006, 64
    %v1009 = vpop.permute.xlu0 %1008
    %v1011 = vmul.f32 %v993, %v1009
    %v1012 = vsel %vm201, %v908, 0
    %1014 = vmatprep.subr.mxu0 0.0
    %1015 = vmatpush1.msra.mxu0 0.0
    %1016 = vmatprep.subr.mxu0 0.0
    %1017 = vmatpush1.msra.mxu0 0.0
    %1018 = vmatprep.subr.mxu0 0.0
    %1019 = vmatpush1.msra.mxu0 0.0
    %1020 = vmatprep.subr.mxu0 0.0
    %1021 = vmatpush1.msra.mxu0 0.0
    %1022 = vmatprep.subr.mxu0 0.0
    %1023 = vmatpush1.msra.mxu0 0.0
    %1024 = vmatprep.subr.mxu0 0.0
    %1025 = vmatpush1.msra.mxu0 0.0
    %1026 = vmatprep.subr.mxu0 0.0
    %1027 = vmatpush1.msra.mxu0 0.0
    %1028 = vmatprep.subr.mxu0 0.0
    %1029 = vmatpush1.msra.mxu0 0.0
    %1030 = vmatprep.subr.mxu0 0.0
    %1031 = vmatpush1.msra.mxu0 0.0
    %1032 = vmatprep.subr.mxu0 0.0
    %1033 = vmatpush1.msra.mxu0 0.0
    %1034 = vmatprep.subr.mxu0 0.0
    %1035 = vmatpush1.msra.mxu0 0.0
    %1036 = vmatprep.subr.mxu0 0.0
    %1037 = vmatpush1.msra.mxu0 0.0
    %1038 = vmatprep.subr.mxu0 0.0
    %1039 = vmatpush1.msra.mxu0 %v185
    %1040 = vmatprep.subr.mxu0 0.0
    %1041 = vmatpush1.msra.mxu0 %v184
    %1042 = vmatprep.subr.mxu0 0.0
    %1043 = vmatpush1.msra.mxu0 %v183
    %1044 = vmatprep.subr.mxu0 0.0
    %1045 = vmatpush1.msra.mxu0 %v182
    %1046 = vmatprep.subr.mxu0 0.0
    %1047 = vmatpush2.msra.mxu0 0.0
    %1048 = vmatprep.subr.mxu0 0.0
    %1049 = vmatpush2.msra.mxu0 0.0
    %1050 = vmatprep.subr.mxu0 0.0
    %1051 = vmatpush2.msra.mxu0 0.0
    %1052 = vmatprep.subr.mxu0 0.0
    %1053 = vmatpush2.msra.mxu0 0.0
    %1054 = vmatprep.subr.mxu0 0.0
    %1055 = vmatpush2.msra.mxu0 0.0
    %1056 = vmatprep.subr.mxu0 0.0
    %1057 = vmatpush2.msra.mxu0 0.0
    %1058 = vmatprep.subr.mxu0 0.0
    %1059 = vmatpush2.msra.mxu0 0.0
    %1060 = vmatprep.subr.mxu0 0.0
    %1061 = vmatpush2.msra.mxu0 0.0
    %1062 = vmatprep.subr.mxu0 0.0
    %1063 = vmatpush2.msra.mxu0 0.0
    %1064 = vmatprep.subr.mxu0 0.0
    %1065 = vmatpush2.msra.mxu0 0.0
    %1066 = vmatprep.subr.mxu0 0.0
    %1067 = vmatpush2.msra.mxu0 0.0
    %1068 = vmatprep.subr.mxu0 0.0
    %1069 = vmatpush2.msra.mxu0 0.0
    %1070 = vmatprep.subr.mxu0 0.0
    %1071 = vmatpush2.msra.mxu0 0.0
    %1072 = vmatprep.subr.mxu0 0.0
    %1073 = vmatpush2.msra.mxu0 0.0
    %1074 = vmatprep.subr.mxu0 0.0
    %1075 = vmatpush2.msra.mxu0 0.0
    %1076 = vmatprep.subr.mxu0 0.0
    %1077 = vmatpush2.msra.mxu0 0.0
    %1078 = vmatprep.mubr.f32.mxu0 0.0
    %1079 = vmatmul.mubr.f32.gmra.mxu0 %v1012
    %v1080 = vpop.f32.mrf.mxu0
    %v1081 = vadd.f32 0.0, %v1080
    %v1082 = vpop.f32.mrf.mxu0
    %1083 = vdwg.mxu0
    %v1084 = vadd.f32 %v164, %v1081
    %v1085 = vxor.u32 %v1084, 2147483648
    %v1086 = vmul.f32 %v1085, 1.442695
    %v1087 = vpow.pop %v1086
    %v1088 = vadd.f32 %v1087, 1.0
    %v1089 = vrcp.pop %v1088
    %v1090 = vmul.f32 1.0, %v1089
    %v1091 = vtanh.pop %v1084
    %v1092 = vmul.f32 %v1090, %v899
    %1094 = vrot.lane.b32.xlu0 %v1091, 64
    %v1095 = vpop.permute.xlu0 %1094
    %v1097 = vmul.f32 %v1090, %v1095
    %1099 = vrot.lane.b32.xlu0 %v1097, 32
    %v1100 = vpop.permute.xlu0 %1099
    %v1102 = vadd.f32 %v1092, %v1100
    %v1103 = vtanh.pop %v1102
    %1105 = vrot.lane.b32.xlu0 %v1103, 64
    %v1106 = vpop.permute.xlu0 %1105
    %v1108 = vmul.f32 %v1090, %v1106
    %1110 = vrot.lane.b32.xlu0 %v1108, 32
    %v1111 = vpop.permute.xlu0 %1110
    %1114 = vrot.lane.b32.xlu0 %v1011, 64
    %v1115 = vpop.permute.xlu0 %1114
    %v1117 = vsel %vm201, %v1111, %v1115
    %v1119 = vsel %vm305, %v1117, 0
    %1121 = vmatprep.subr.mxu0 0.0
    %1122 = vmatpush1.msra.mxu0 0.0
    %1123 = vmatprep.subr.mxu0 0.0
    %1124 = vmatpush1.msra.mxu0 0.0
    %1125 = vmatprep.subr.mxu0 0.0
    %1126 = vmatpush1.msra.mxu0 0.0
    %1127 = vmatprep.subr.mxu0 0.0
    %1128 = vmatpush1.msra.mxu0 0.0
    %1129 = vmatprep.subr.mxu0 0.0
    %1130 = vmatpush1.msra.mxu0 0.0
    %1131 = vmatprep.subr.mxu0 0.0
    %1132 = vmatpush1.msra.mxu0 0.0
    %1133 = vmatprep.subr.mxu0 0.0
    %1134 = vmatpush1.msra.mxu0 0.0
    %1135 = vmatprep.subr.mxu0 0.0
    %1136 = vmatpush1.msra.mxu0 0.0
    %1137 = vmatprep.subr.mxu0 0.0
    %1138 = vmatpush1.msra.mxu0 %v193
    %1139 = vmatprep.subr.mxu0 0.0
    %1140 = vmatpush1.msra.mxu0 %v192
    %1141 = vmatprep.subr.mxu0 0.0
    %1142 = vmatpush1.msra.mxu0 %v191
    %1143 = vmatprep.subr.mxu0 0.0
    %1144 = vmatpush1.msra.mxu0 %v190
    %1145 = vmatprep.subr.mxu0 0.0
    %1146 = vmatpush1.msra.mxu0 %v189
    %1147 = vmatprep.subr.mxu0 0.0
    %1148 = vmatpush1.msra.mxu0 %v188
    %1149 = vmatprep.subr.mxu0 0.0
    %1150 = vmatpush1.msra.mxu0 %v187
    %1151 = vmatprep.subr.mxu0 0.0
    %1152 = vmatpush1.msra.mxu0 %v186
    %1153 = vmatprep.subr.mxu0 0.0
    %1154 = vmatpush2.msra.mxu0 0.0
    %1155 = vmatprep.subr.mxu0 0.0
    %1156 = vmatpush2.msra.mxu0 0.0
    %1157 = vmatprep.subr.mxu0 0.0
    %1158 = vmatpush2.msra.mxu0 0.0
    %1159 = vmatprep.subr.mxu0 0.0
    %1160 = vmatpush2.msra.mxu0 0.0
    %1161 = vmatprep.subr.mxu0 0.0
    %1162 = vmatpush2.msra.mxu0 0.0
    %1163 = vmatprep.subr.mxu0 0.0
    %1164 = vmatpush2.msra.mxu0 0.0
    %1165 = vmatprep.subr.mxu0 0.0
    %1166 = vmatpush2.msra.mxu0 0.0
    %1167 = vmatprep.subr.mxu0 0.0
    %1168 = vmatpush2.msra.mxu0 0.0
    %1169 = vmatprep.subr.mxu0 0.0
    %1170 = vmatpush2.msra.mxu0 0.0
    %1171 = vmatprep.subr.mxu0 0.0
    %1172 = vmatpush2.msra.mxu0 0.0
    %1173 = vmatprep.subr.mxu0 0.0
    %1174 = vmatpush2.msra.mxu0 0.0
    %1175 = vmatprep.subr.mxu0 0.0
    %1176 = vmatpush2.msra.mxu0 0.0
    %1177 = vmatprep.subr.mxu0 0.0
    %1178 = vmatpush2.msra.mxu0 0.0
    %1179 = vmatprep.subr.mxu0 0.0
    %1180 = vmatpush2.msra.mxu0 0.0
    %1181 = vmatprep.subr.mxu0 0.0
    %1182 = vmatpush2.msra.mxu0 0.0
    %1183 = vmatprep.subr.mxu0 0.0
    %1184 = vmatpush2.msra.mxu0 0.0
    %1185 = vmatprep.mubr.f32.mxu0 0.0
    %1186 = vmatmul.mubr.f32.gmra.mxu0 %v1119
    %v1187 = vpop.f32.mrf.mxu0
    %v1188 = vadd.f32 %v199, %v1187
    %v1189 = vpop.f32.mrf.mxu0
    %1190 = vdwg.mxu0
    %v1191 = vxor.u32 %v1188, 2147483648
    %v1192 = vmul.f32 %v1191, 1.442695
    %v1193 = vpow.pop %v1192
    %v1194 = vadd.f32 %v1193, 1.0
    %v1195 = vrcp.pop %v1194
    %v1196 = vmul.f32 1.0, %v1195
    %v1197 = vtanh.pop %v1188
    %v1198 = vmul.f32 %v1196, %v1005
    %1200 = vrot.lane.b32.xlu0 %v1197, 64
    %v1201 = vpop.permute.xlu0 %1200
    %v1203 = vmul.f32 %v1196, %v1201
    %1205 = vrot.lane.b32.xlu0 %v1203, 32
    %v1206 = vpop.permute.xlu0 %1205
    %v1208 = vadd.f32 %v1198, %v1206
    %v1209 = vtanh.pop %v1208
    %1211 = vrot.lane.b32.xlu0 %v1209, 64
    %v1212 = vpop.permute.xlu0 %1211
    %v1214 = vmul.f32 %v1196, %v1212
    %v1215 = vsel %vm201, %v1111, 0
    %1217 = vmatprep.subr.mxu0 0.0
    %1218 = vmatpush1.msra.mxu0 0.0
    %1219 = vmatprep.subr.mxu0 0.0
    %1220 = vmatpush1.msra.mxu0 0.0
    %1221 = vmatprep.subr.mxu0 0.0
    %1222 = vmatpush1.msra.mxu0 0.0
    %1223 = vmatprep.subr.mxu0 0.0
    %1224 = vmatpush1.msra.mxu0 0.0
    %1225 = vmatprep.subr.mxu0 0.0
    %1226 = vmatpush1.msra.mxu0 0.0
    %1227 = vmatprep.subr.mxu0 0.0
    %1228 = vmatpush1.msra.mxu0 0.0
    %1229 = vmatprep.subr.mxu0 0.0
    %1230 = vmatpush1.msra.mxu0 0.0
    %1231 = vmatprep.subr.mxu0 0.0
    %1232 = vmatpush1.msra.mxu0 0.0
    %1233 = vmatprep.subr.mxu0 0.0
    %1234 = vmatpush1.msra.mxu0 0.0
    %1235 = vmatprep.subr.mxu0 0.0
    %1236 = vmatpush1.msra.mxu0 0.0
    %1237 = vmatprep.subr.mxu0 0.0
    %1238 = vmatpush1.msra.mxu0 0.0
    %1239 = vmatprep.subr.mxu0 0.0
    %1240 = vmatpush1.msra.mxu0 0.0
    %1241 = vmatprep.subr.mxu0 0.0
    %1242 = vmatpush1.msra.mxu0 %v185
    %1243 = vmatprep.subr.mxu0 0.0
    %1244 = vmatpush1.msra.mxu0 %v184
    %1245 = vmatprep.subr.mxu0 0.0
    %1246 = vmatpush1.msra.mxu0 %v183
    %1247 = vmatprep.subr.mxu0 0.0
    %1248 = vmatpush1.msra.mxu0 %v182
    %1249 = vmatprep.subr.mxu0 0.0
    %1250 = vmatpush2.msra.mxu0 0.0
    %1251 = vmatprep.subr.mxu0 0.0
    %1252 = vmatpush2.msra.mxu0 0.0
    %1253 = vmatprep.subr.mxu0 0.0
    %1254 = vmatpush2.msra.mxu0 0.0
    %1255 = vmatprep.subr.mxu0 0.0
    %1256 = vmatpush2.msra.mxu0 0.0
    %1257 = vmatprep.subr.mxu0 0.0
    %1258 = vmatpush2.msra.mxu0 0.0
    %1259 = vmatprep.subr.mxu0 0.0
    %1260 = vmatpush2.msra.mxu0 0.0
    %1261 = vmatprep.subr.mxu0 0.0
    %1262 = vmatpush2.msra.mxu0 0.0
    %1263 = vmatprep.subr.mxu0 0.0
    %1264 = vmatpush2.msra.mxu0 0.0
    %1265 = vmatprep.subr.mxu0 0.0
    %1266 = vmatpush2.msra.mxu0 0.0
    %1267 = vmatprep.subr.mxu0 0.0
    %1268 = vmatpush2.msra.mxu0 0.0
    %1269 = vmatprep.subr.mxu0 0.0
    %1270 = vmatpush2.msra.mxu0 0.0
    %1271 = vmatprep.subr.mxu0 0.0
    %1272 = vmatpush2.msra.mxu0 0.0
    %1273 = vmatprep.subr.mxu0 0.0
    %1274 = vmatpush2.msra.mxu0 0.0
    %1275 = vmatprep.subr.mxu0 0.0
    %1276 = vmatpush2.msra.mxu0 0.0
    %1277 = vmatprep.subr.mxu0 0.0
    %1278 = vmatpush2.msra.mxu0 0.0
    %1279 = vmatprep.subr.mxu0 0.0
    %1280 = vmatpush2.msra.mxu0 0.0
    %1281 = vmatprep.mubr.f32.mxu0 0.0
    %1282 = vmatmul.mubr.f32.gmra.mxu0 %v1215
    %v1283 = vpop.f32.mrf.mxu0
    %v1284 = vadd.f32 0.0, %v1283
    %v1285 = vpop.f32.mrf.mxu0
    %1286 = vdwg.mxu0
    %v1287 = vadd.f32 %v169, %v1284
    %v1288 = vxor.u32 %v1287, 2147483648
    %v1289 = vmul.f32 %v1288, 1.442695
    %v1290 = vpow.pop %v1289
    %v1291 = vadd.f32 %v1290, 1.0
    %v1292 = vrcp.pop %v1291
    %v1293 = vmul.f32 1.0, %v1292
    %v1294 = vtanh.pop %v1287
    %v1295 = vmul.f32 %v1293, %v1102
    %1297 = vrot.lane.b32.xlu0 %v1294, 64
    %v1298 = vpop.permute.xlu0 %1297
    %v1300 = vmul.f32 %v1293, %v1298
    %1302 = vrot.lane.b32.xlu0 %v1300, 32
    %v1303 = vpop.permute.xlu0 %1302
    %v1305 = vadd.f32 %v1295, %v1303
    %v1306 = vtanh.pop %v1305
    %1308 = vrot.lane.b32.xlu0 %v1306, 64
    %v1309 = vpop.permute.xlu0 %1308
    %v1311 = vmul.f32 %v1293, %v1309
    %1313 = vrot.lane.b32.xlu0 %v1311, 32
    %v1314 = vpop.permute.xlu0 %1313
    %1317 = vrot.lane.b32.xlu0 %v1214, 64
    %v1318 = vpop.permute.xlu0 %1317
    %v1320 = vsel %vm201, %v1314, %v1318
    %v1322 = vsel %vm305, %v1320, 0
    %1324 = vmatprep.subr.mxu0 0.0
    %1325 = vmatpush1.msra.mxu0 0.0
    %1326 = vmatprep.subr.mxu0 0.0
    %1327 = vmatpush1.msra.mxu0 0.0
    %1328 = vmatprep.subr.mxu0 0.0
    %1329 = vmatpush1.msra.mxu0 0.0
    %1330 = vmatprep.subr.mxu0 0.0
    %1331 = vmatpush1.msra.mxu0 0.0
    %1332 = vmatprep.subr.mxu0 0.0
    %1333 = vmatpush1.msra.mxu0 0.0
    %1334 = vmatprep.subr.mxu0 0.0
    %1335 = vmatpush1.msra.mxu0 0.0
    %1336 = vmatprep.subr.mxu0 0.0
    %1337 = vmatpush1.msra.mxu0 0.0
    %1338 = vmatprep.subr.mxu0 0.0
    %1339 = vmatpush1.msra.mxu0 0.0
    %1340 = vmatprep.subr.mxu0 0.0
    %1341 = vmatpush1.msra.mxu0 %v193
    %1342 = vmatprep.subr.mxu0 0.0
    %1343 = vmatpush1.msra.mxu0 %v192
    %1344 = vmatprep.subr.mxu0 0.0
    %1345 = vmatpush1.msra.mxu0 %v191
    %1346 = vmatprep.subr.mxu0 0.0
    %1347 = vmatpush1.msra.mxu0 %v190
    %1348 = vmatprep.subr.mxu0 0.0
    %1349 = vmatpush1.msra.mxu0 %v189
    %1350 = vmatprep.subr.mxu0 0.0
    %1351 = vmatpush1.msra.mxu0 %v188
    %1352 = vmatprep.subr.mxu0 0.0
    %1353 = vmatpush1.msra.mxu0 %v187
    %1354 = vmatprep.subr.mxu0 0.0
    %1355 = vmatpush1.msra.mxu0 %v186
    %1356 = vmatprep.subr.mxu0 0.0
    %1357 = vmatpush2.msra.mxu0 0.0
    %1358 = vmatprep.subr.mxu0 0.0
    %1359 = vmatpush2.msra.mxu0 0.0
    %1360 = vmatprep.subr.mxu0 0.0
    %1361 = vmatpush2.msra.mxu0 0.0
    %1362 = vmatprep.subr.mxu0 0.0
    %1363 = vmatpush2.msra.mxu0 0.0
    %1364 = vmatprep.subr.mxu0 0.0
    %1365 = vmatpush2.msra.mxu0 0.0
    %1366 = vmatprep.subr.mxu0 0.0
    %1367 = vmatpush2.msra.mxu0 0.0
    %1368 = vmatprep.subr.mxu0 0.0
    %1369 = vmatpush2.msra.mxu0 0.0
    %1370 = vmatprep.subr.mxu0 0.0
    %1371 = vmatpush2.msra.mxu0 0.0
    %1372 = vmatprep.subr.mxu0 0.0
    %1373 = vmatpush2.msra.mxu0 0.0
    %1374 = vmatprep.subr.mxu0 0.0
    %1375 = vmatpush2.msra.mxu0 0.0
    %1376 = vmatprep.subr.mxu0 0.0
    %1377 = vmatpush2.msra.mxu0 0.0
    %1378 = vmatprep.subr.mxu0 0.0
    %1379 = vmatpush2.msra.mxu0 0.0
    %1380 = vmatprep.subr.mxu0 0.0
    %1381 = vmatpush2.msra.mxu0 0.0
    %1382 = vmatprep.subr.mxu0 0.0
    %1383 = vmatpush2.msra.mxu0 0.0
    %1384 = vmatprep.subr.mxu0 0.0
    %1385 = vmatpush2.msra.mxu0 0.0
    %1386 = vmatprep.subr.mxu0 0.0
    %1387 = vmatpush2.msra.mxu0 0.0
    %1388 = vmatprep.mubr.f32.mxu0 0.0
    %1389 = vmatmul.mubr.f32.gmra.mxu0 %v1322
    %v1390 = vpop.f32.mrf.mxu0
    %v1391 = vadd.f32 %v199, %v1390
    %v1392 = vpop.f32.mrf.mxu0
    %1393 = vdwg.mxu0
    %v1394 = vxor.u32 %v1391, 2147483648
    %v1395 = vmul.f32 %v1394, 1.442695
    %v1396 = vpow.pop %v1395
    %v1397 = vadd.f32 %v1396, 1.0
    %v1398 = vrcp.pop %v1397
    %v1399 = vmul.f32 1.0, %v1398
    %v1400 = vtanh.pop %v1391
    %v1401 = vmul.f32 %v1399, %v1208
    %1403 = vrot.lane.b32.xlu0 %v1400, 64
    %v1404 = vpop.permute.xlu0 %1403
    %v1406 = vmul.f32 %v1399, %v1404
    %1408 = vrot.lane.b32.xlu0 %v1406, 32
    %v1409 = vpop.permute.xlu0 %1408
    %v1411 = vadd.f32 %v1401, %v1409
    %v1412 = vtanh.pop %v1411
    %1414 = vrot.lane.b32.xlu0 %v1412, 64
    %v1415 = vpop.permute.xlu0 %1414
    %v1417 = vmul.f32 %v1399, %v1415
    %v1418 = vsel %vm201, %v1314, 0
    %1420 = vmatprep.subr.mxu0 0.0
    %1421 = vmatpush1.msra.mxu0 0.0
    %1422 = vmatprep.subr.mxu0 0.0
    %1423 = vmatpush1.msra.mxu0 0.0
    %1424 = vmatprep.subr.mxu0 0.0
    %1425 = vmatpush1.msra.mxu0 0.0
    %1426 = vmatprep.subr.mxu0 0.0
    %1427 = vmatpush1.msra.mxu0 0.0
    %1428 = vmatprep.subr.mxu0 0.0
    %1429 = vmatpush1.msra.mxu0 0.0
    %1430 = vmatprep.subr.mxu0 0.0
    %1431 = vmatpush1.msra.mxu0 0.0
    %1432 = vmatprep.subr.mxu0 0.0
    %1433 = vmatpush1.msra.mxu0 0.0
    %1434 = vmatprep.subr.mxu0 0.0
    %1435 = vmatpush1.msra.mxu0 0.0
    %1436 = vmatprep.subr.mxu0 0.0
    %1437 = vmatpush1.msra.mxu0 0.0
    %1438 = vmatprep.subr.mxu0 0.0
    %1439 = vmatpush1.msra.mxu0 0.0
    %1440 = vmatprep.subr.mxu0 0.0
    %1441 = vmatpush1.msra.mxu0 0.0
    %1442 = vmatprep.subr.mxu0 0.0
    %1443 = vmatpush1.msra.mxu0 0.0
    %1444 = vmatprep.subr.mxu0 0.0
    %1445 = vmatpush1.msra.mxu0 %v185
    %1446 = vmatprep.subr.mxu0 0.0
    %1447 = vmatpush1.msra.mxu0 %v184
    %1448 = vmatprep.subr.mxu0 0.0
    %1449 = vmatpush1.msra.mxu0 %v183
    %1450 = vmatprep.subr.mxu0 0.0
    %1451 = vmatpush1.msra.mxu0 %v182
    %1452 = vmatprep.subr.mxu0 0.0
    %1453 = vmatpush2.msra.mxu0 0.0
    %1454 = vmatprep.subr.mxu0 0.0
    %1455 = vmatpush2.msra.mxu0 0.0
    %1456 = vmatprep.subr.mxu0 0.0
    %1457 = vmatpush2.msra.mxu0 0.0
    %1458 = vmatprep.subr.mxu0 0.0
    %1459 = vmatpush2.msra.mxu0 0.0
    %1460 = vmatprep.subr.mxu0 0.0
    %1461 = vmatpush2.msra.mxu0 0.0
    %1462 = vmatprep.subr.mxu0 0.0
    %1463 = vmatpush2.msra.mxu0 0.0
    %1464 = vmatprep.subr.mxu0 0.0
    %1465 = vmatpush2.msra.mxu0 0.0
    %1466 = vmatprep.subr.mxu0 0.0
    %1467 = vmatpush2.msra.mxu0 0.0
    %1468 = vmatprep.subr.mxu0 0.0
    %1469 = vmatpush2.msra.mxu0 0.0
    %1470 = vmatprep.subr.mxu0 0.0
    %1471 = vmatpush2.msra.mxu0 0.0
    %1472 = vmatprep.subr.mxu0 0.0
    %1473 = vmatpush2.msra.mxu0 0.0
    %1474 = vmatprep.subr.mxu0 0.0
    %1475 = vmatpush2.msra.mxu0 0.0
    %1476 = vmatprep.subr.mxu0 0.0
    %1477 = vmatpush2.msra.mxu0 0.0
    %1478 = vmatprep.subr.mxu0 0.0
    %1479 = vmatpush2.msra.mxu0 0.0
    %1480 = vmatprep.subr.mxu0 0.0
    %1481 = vmatpush2.msra.mxu0 0.0
    %1482 = vmatprep.subr.mxu0 0.0
    %1483 = vmatpush2.msra.mxu0 0.0
    %1484 = vmatprep.mubr.f32.mxu0 0.0
    %1485 = vmatmul.mubr.f32.gmra.mxu0 %v1418
    %v1486 = vpop.f32.mrf.mxu0
    %v1487 = vadd.f32 0.0, %v1486
    %v1488 = vpop.f32.mrf.mxu0
    %1489 = vdwg.mxu0
    %v1490 = vadd.f32 %v174, %v1487
    %v1491 = vxor.u32 %v1490, 2147483648
    %v1492 = vmul.f32 %v1491, 1.442695
    %v1493 = vpow.pop %v1492
    %v1494 = vadd.f32 %v1493, 1.0
    %v1495 = vrcp.pop %v1494
    %v1496 = vmul.f32 1.0, %v1495
    %v1497 = vtanh.pop %v1490
    %v1498 = vmul.f32 %v1496, %v1305
    %1500 = vrot.lane.b32.xlu0 %v1497, 64
    %v1501 = vpop.permute.xlu0 %1500
    %v1503 = vmul.f32 %v1496, %v1501
    %1505 = vrot.lane.b32.xlu0 %v1503, 32
    %v1506 = vpop.permute.xlu0 %1505
    %v1508 = vadd.f32 %v1498, %v1506
    %v1509 = vtanh.pop %v1508
    %1511 = vrot.lane.b32.xlu0 %v1509, 64
    %v1512 = vpop.permute.xlu0 %1511
    %v1514 = vmul.f32 %v1496, %v1512
    %1516 = vrot.lane.b32.xlu0 %v1514, 32
    %v1517 = vpop.permute.xlu0 %1516
    %1520 = vrot.lane.b32.xlu0 %v1417, 64
    %v1521 = vpop.permute.xlu0 %1520
    %v1523 = vsel %vm201, %v1517, %v1521
    %v1525 = vsel %vm305, %v1523, 0
    %1527 = vmatprep.subr.mxu0 0.0
    %1528 = vmatpush1.msra.mxu0 0.0
    %1529 = vmatprep.subr.mxu0 0.0
    %1530 = vmatpush1.msra.mxu0 0.0
    %1531 = vmatprep.subr.mxu0 0.0
    %1532 = vmatpush1.msra.mxu0 0.0
    %1533 = vmatprep.subr.mxu0 0.0
    %1534 = vmatpush1.msra.mxu0 0.0
    %1535 = vmatprep.subr.mxu0 0.0
    %1536 = vmatpush1.msra.mxu0 0.0
    %1537 = vmatprep.subr.mxu0 0.0
    %1538 = vmatpush1.msra.mxu0 0.0
    %1539 = vmatprep.subr.mxu0 0.0
    %1540 = vmatpush1.msra.mxu0 0.0
    %1541 = vmatprep.subr.mxu0 0.0
    %1542 = vmatpush1.msra.mxu0 0.0
    %1543 = vmatprep.subr.mxu0 0.0
    %1544 = vmatpush1.msra.mxu0 %v193
    %1545 = vmatprep.subr.mxu0 0.0
    %1546 = vmatpush1.msra.mxu0 %v192
    %1547 = vmatprep.subr.mxu0 0.0
    %1548 = vmatpush1.msra.mxu0 %v191
    %1549 = vmatprep.subr.mxu0 0.0
    %1550 = vmatpush1.msra.mxu0 %v190
    %1551 = vmatprep.subr.mxu0 0.0
    %1552 = vmatpush1.msra.mxu0 %v189
    %1553 = vmatprep.subr.mxu0 0.0
    %1554 = vmatpush1.msra.mxu0 %v188
    %1555 = vmatprep.subr.mxu0 0.0
    %1556 = vmatpush1.msra.mxu0 %v187
    %1557 = vmatprep.subr.mxu0 0.0
    %1558 = vmatpush1.msra.mxu0 %v186
    %1559 = vmatprep.subr.mxu0 0.0
    %1560 = vmatpush2.msra.mxu0 0.0
    %1561 = vmatprep.subr.mxu0 0.0
    %1562 = vmatpush2.msra.mxu0 0.0
    %1563 = vmatprep.subr.mxu0 0.0
    %1564 = vmatpush2.msra.mxu0 0.0
    %1565 = vmatprep.subr.mxu0 0.0
    %1566 = vmatpush2.msra.mxu0 0.0
    %1567 = vmatprep.subr.mxu0 0.0
    %1568 = vmatpush2.msra.mxu0 0.0
    %1569 = vmatprep.subr.mxu0 0.0
    %1570 = vmatpush2.msra.mxu0 0.0
    %1571 = vmatprep.subr.mxu0 0.0
    %1572 = vmatpush2.msra.mxu0 0.0
    %1573 = vmatprep.subr.mxu0 0.0
    %1574 = vmatpush2.msra.mxu0 0.0
    %1575 = vmatprep.subr.mxu0 0.0
    %1576 = vmatpush2.msra.mxu0 0.0
    %1577 = vmatprep.subr.mxu0 0.0
    %1578 = vmatpush2.msra.mxu0 0.0
    %1579 = vmatprep.subr.mxu0 0.0
    %1580 = vmatpush2.msra.mxu0 0.0
    %1581 = vmatprep.subr.mxu0 0.0
    %1582 = vmatpush2.msra.mxu0 0.0
    %1583 = vmatprep.subr.mxu0 0.0
    %1584 = vmatpush2.msra.mxu0 0.0
    %1585 = vmatprep.subr.mxu0 0.0
    %1586 = vmatpush2.msra.mxu0 0.0
    %1587 = vmatprep.subr.mxu0 0.0
    %1588 = vmatpush2.msra.mxu0 0.0
    %1589 = vmatprep.subr.mxu0 0.0
    %1590 = vmatpush2.msra.mxu0 0.0
    %1591 = vmatprep.mubr.f32.mxu0 0.0
    %1592 = vmatmul.mubr.f32.gmra.mxu0 %v1525
    %v1593 = vpop.f32.mrf.mxu0
    %v1594 = vadd.f32 %v199, %v1593
    %v1595 = vpop.f32.mrf.mxu0
    %1596 = vdwg.mxu0
    %v1597 = vxor.u32 %v1594, 2147483648
    %v1598 = vmul.f32 %v1597, 1.442695
    %v1599 = vpow.pop %v1598
    %v1600 = vadd.f32 %v1599, 1.0
    %v1601 = vrcp.pop %v1600
    %v1602 = vmul.f32 1.0, %v1601
    %v1603 = vtanh.pop %v1594
    %v1604 = vmul.f32 %v1602, %v1411
    %1606 = vrot.lane.b32.xlu0 %v1603, 64
    %v1607 = vpop.permute.xlu0 %1606
    %v1609 = vmul.f32 %v1602, %v1607
    %1611 = vrot.lane.b32.xlu0 %v1609, 32
    %v1612 = vpop.permute.xlu0 %1611
    %v1614 = vadd.f32 %v1604, %v1612
    %v1615 = vtanh.pop %v1614
    %1617 = vrot.lane.b32.xlu0 %v1615, 64
    %v1618 = vpop.permute.xlu0 %1617
    %v1620 = vmul.f32 %v1602, %v1618
    %v1621 = vsel %vm201, %v1517, 0
    %1623 = vmatprep.subr.mxu0 0.0
    %1624 = vmatpush1.msra.mxu0 0.0
    %1625 = vmatprep.subr.mxu0 0.0
    %1626 = vmatpush1.msra.mxu0 0.0
    %1627 = vmatprep.subr.mxu0 0.0
    %1628 = vmatpush1.msra.mxu0 0.0
    %1629 = vmatprep.subr.mxu0 0.0
    %1630 = vmatpush1.msra.mxu0 0.0
    %1631 = vmatprep.subr.mxu0 0.0
    %1632 = vmatpush1.msra.mxu0 0.0
    %1633 = vmatprep.subr.mxu0 0.0
    %1634 = vmatpush1.msra.mxu0 0.0
    %1635 = vmatprep.subr.mxu0 0.0
    %1636 = vmatpush1.msra.mxu0 0.0
    %1637 = vmatprep.subr.mxu0 0.0
    %1638 = vmatpush1.msra.mxu0 0.0
    %1639 = vmatprep.subr.mxu0 0.0
    %1640 = vmatpush1.msra.mxu0 0.0
    %1641 = vmatprep.subr.mxu0 0.0
    %1642 = vmatpush1.msra.mxu0 0.0
    %1643 = vmatprep.subr.mxu0 0.0
    %1644 = vmatpush1.msra.mxu0 0.0
    %1645 = vmatprep.subr.mxu0 0.0
    %1646 = vmatpush1.msra.mxu0 0.0
    %1647 = vmatprep.subr.mxu0 0.0
    %1648 = vmatpush1.msra.mxu0 %v185
    %1649 = vmatprep.subr.mxu0 0.0
    %1650 = vmatpush1.msra.mxu0 %v184
    %1651 = vmatprep.subr.mxu0 0.0
    %1652 = vmatpush1.msra.mxu0 %v183
    %1653 = vmatprep.subr.mxu0 0.0
    %1654 = vmatpush1.msra.mxu0 %v182
    %1655 = vmatprep.subr.mxu0 0.0
    %1656 = vmatpush2.msra.mxu0 0.0
    %1657 = vmatprep.subr.mxu0 0.0
    %1658 = vmatpush2.msra.mxu0 0.0
    %1659 = vmatprep.subr.mxu0 0.0
    %1660 = vmatpush2.msra.mxu0 0.0
    %1661 = vmatprep.subr.mxu0 0.0
    %1662 = vmatpush2.msra.mxu0 0.0
    %1663 = vmatprep.subr.mxu0 0.0
    %1664 = vmatpush2.msra.mxu0 0.0
    %1665 = vmatprep.subr.mxu0 0.0
    %1666 = vmatpush2.msra.mxu0 0.0
    %1667 = vmatprep.subr.mxu0 0.0
    %1668 = vmatpush2.msra.mxu0 0.0
    %1669 = vmatprep.subr.mxu0 0.0
    %1670 = vmatpush2.msra.mxu0 0.0
    %1671 = vmatprep.subr.mxu0 0.0
    %1672 = vmatpush2.msra.mxu0 0.0
    %1673 = vmatprep.subr.mxu0 0.0
    %1674 = vmatpush2.msra.mxu0 0.0
    %1675 = vmatprep.subr.mxu0 0.0
    %1676 = vmatpush2.msra.mxu0 0.0
    %1677 = vmatprep.subr.mxu0 0.0
    %1678 = vmatpush2.msra.mxu0 0.0
    %1679 = vmatprep.subr.mxu0 0.0
    %1680 = vmatpush2.msra.mxu0 0.0
    %1681 = vmatprep.subr.mxu0 0.0
    %1682 = vmatpush2.msra.mxu0 0.0
    %1683 = vmatprep.subr.mxu0 0.0
    %1684 = vmatpush2.msra.mxu0 0.0
    %1685 = vmatprep.subr.mxu0 0.0
    %1686 = vmatpush2.msra.mxu0 0.0
    %1687 = vmatprep.mubr.f32.mxu0 0.0
    %1688 = vmatmul.mubr.f32.gmra.mxu0 %v1621
    %v1689 = vpop.f32.mrf.mxu0
    %v1690 = vadd.f32 0.0, %v1689
    %v1691 = vpop.f32.mrf.mxu0
    %1692 = vdwg.mxu0
    %v1693 = vadd.f32 %v179, %v1690
    %v1694 = vxor.u32 %v1693, 2147483648
    %v1695 = vmul.f32 %v1694, 1.442695
    %v1696 = vpow.pop %v1695
    %v1697 = vadd.f32 %v1696, 1.0
    %v1698 = vrcp.pop %v1697
    %v1699 = vmul.f32 1.0, %v1698
    %v1700 = vtanh.pop %v1693
    %v1701 = vmul.f32 %v1699, %v1508
    %1703 = vrot.lane.b32.xlu0 %v1700, 64
    %v1704 = vpop.permute.xlu0 %1703
    %v1706 = vmul.f32 %v1699, %v1704
    %1708 = vrot.lane.b32.xlu0 %v1706, 32
    %v1709 = vpop.permute.xlu0 %1708
    %v1711 = vadd.f32 %v1701, %v1709
    %v1712 = vtanh.pop %v1711
    %1714 = vrot.lane.b32.xlu0 %v1712, 64
    %v1715 = vpop.permute.xlu0 %1714
    %v1717 = vmul.f32 %v1699, %v1715
    %1719 = vrot.lane.b32.xlu0 %v1717, 32
    %v1720 = vpop.permute.xlu0 %1719
    %1723 = vrot.lane.b32.xlu0 %v1620, 64
    %v1724 = vpop.permute.xlu0 %1723
    %v1726 = vsel %vm201, %v1720, %v1724
    %v1728 = vsel %vm305, %v1726, 0
    %1730 = vmatprep.subr.mxu0 0.0
    %1731 = vmatpush1.msra.mxu0 0.0
    %1732 = vmatprep.subr.mxu0 0.0
    %1733 = vmatpush1.msra.mxu0 0.0
    %1734 = vmatprep.subr.mxu0 0.0
    %1735 = vmatpush1.msra.mxu0 0.0
    %1736 = vmatprep.subr.mxu0 0.0
    %1737 = vmatpush1.msra.mxu0 0.0
    %1738 = vmatprep.subr.mxu0 0.0
    %1739 = vmatpush1.msra.mxu0 0.0
    %1740 = vmatprep.subr.mxu0 0.0
    %1741 = vmatpush1.msra.mxu0 0.0
    %1742 = vmatprep.subr.mxu0 0.0
    %1743 = vmatpush1.msra.mxu0 0.0
    %1744 = vmatprep.subr.mxu0 0.0
    %1745 = vmatpush1.msra.mxu0 0.0
    %1746 = vmatprep.subr.mxu0 0.0
    %1747 = vmatpush1.msra.mxu0 %v193
    %1748 = vmatprep.subr.mxu0 0.0
    %1749 = vmatpush1.msra.mxu0 %v192
    %1750 = vmatprep.subr.mxu0 0.0
    %1751 = vmatpush1.msra.mxu0 %v191
    %1752 = vmatprep.subr.mxu0 0.0
    %1753 = vmatpush1.msra.mxu0 %v190
    %1754 = vmatprep.subr.mxu0 0.0
    %1755 = vmatpush1.msra.mxu0 %v189
    %1756 = vmatprep.subr.mxu0 0.0
    %1757 = vmatpush1.msra.mxu0 %v188
    %1758 = vmatprep.subr.mxu0 0.0
    %1759 = vmatpush1.msra.mxu0 %v187
    %1760 = vmatprep.subr.mxu0 0.0
    %1761 = vmatpush1.msra.mxu0 %v186
    %1762 = vmatprep.subr.mxu0 0.0
    %1763 = vmatpush2.msra.mxu0 0.0
    %1764 = vmatprep.subr.mxu0 0.0
    %1765 = vmatpush2.msra.mxu0 0.0
    %1766 = vmatprep.subr.mxu0 0.0
    %1767 = vmatpush2.msra.mxu0 0.0
    %1768 = vmatprep.subr.mxu0 0.0
    %1769 = vmatpush2.msra.mxu0 0.0
    %1770 = vmatprep.subr.mxu0 0.0
    %1771 = vmatpush2.msra.mxu0 0.0
    %1772 = vmatprep.subr.mxu0 0.0
    %1773 = vmatpush2.msra.mxu0 0.0
    %1774 = vmatprep.subr.mxu0 0.0
    %1775 = vmatpush2.msra.mxu0 0.0
    %1776 = vmatprep.subr.mxu0 0.0
    %1777 = vmatpush2.msra.mxu0 0.0
    %1778 = vmatprep.subr.mxu0 0.0
    %1779 = vmatpush2.msra.mxu0 0.0
    %1780 = vmatprep.subr.mxu0 0.0
    %1781 = vmatpush2.msra.mxu0 0.0
    %1782 = vmatprep.subr.mxu0 0.0
    %1783 = vmatpush2.msra.mxu0 0.0
    %1784 = vmatprep.subr.mxu0 0.0
    %1785 = vmatpush2.msra.mxu0 0.0
    %1786 = vmatprep.subr.mxu0 0.0
    %1787 = vmatpush2.msra.mxu0 0.0
    %1788 = vmatprep.subr.mxu0 0.0
    %1789 = vmatpush2.msra.mxu0 0.0
    %1790 = vmatprep.subr.mxu0 0.0
    %1791 = vmatpush2.msra.mxu0 0.0
    %1792 = vmatprep.subr.mxu0 0.0
    %1793 = vmatpush2.msra.mxu0 0.0
    %1794 = vmatprep.mubr.f32.mxu0 0.0
    %1795 = vmatmul.mubr.f32.gmra.mxu0 %v1728
    %v1796 = vpop.f32.mrf.mxu0
    %v1797 = vadd.f32 %v199, %v1796
    %v1798 = vpop.f32.mrf.mxu0
    %1799 = vdwg.mxu0
    %v1800 = vxor.u32 %v1797, 2147483648
    %v1801 = vmul.f32 %v1800, 1.442695
    %v1802 = vpow.pop %v1801
    %v1803 = vadd.f32 %v1802, 1.0
    %v1804 = vrcp.pop %v1803
    %v1805 = vmul.f32 1.0, %v1804
    %v1806 = vtanh.pop %v1797
    %v1807 = vmul.f32 %v1805, %v1614
    %1809 = vrot.lane.b32.xlu0 %v1806, 64
    %v1810 = vpop.permute.xlu0 %1809
    %v1812 = vmul.f32 %v1805, %v1810
    %1814 = vrot.lane.b32.xlu0 %v1812, 32
    %v1815 = vpop.permute.xlu0 %1814
    %v1817 = vadd.f32 %v1807, %v1815
    %v1818 = vtanh.pop %v1817
    %1820 = vrot.lane.b32.xlu0 %v1818, 64
    %v1821 = vpop.permute.xlu0 %1820
    %v1823 = vmul.f32 %v1805, %v1821
    %v1824 = vld [vmem:[%s6] sm:$0xff]
    %v1825 = vld [vmem:[%s6 + $0x8] sm:$0xff]
    %v1826 = vld [vmem:[%s6 + $0x10] sm:$0xff]
    %v1827 = vld [vmem:[%s6 + $0x18] sm:$0xff]
    %v1828 = vld [vmem:[%s7] sm:$0x1]
    %v1830 = vlaneseq
    %v1831 = vshrl.u32 %v1830, 7
    %v1832 = vsub.s32 0, %v1831
    %v1833 = vrot.slane %v1828, %v1832
    %1836 = vrot.lane.b32.xlu0 %v1823, 32
    %v1837 = vpop.permute.xlu0 %1836
    %v1838 = vsel %vm201, %v1837, 0
    %1840 = vmatprep.subr.mxu0 0.0
    %1841 = vmatpush1.msra.mxu0 0.0
    %1842 = vmatprep.subr.mxu0 0.0
    %1843 = vmatpush1.msra.mxu0 0.0
    %1844 = vmatprep.subr.mxu0 0.0
    %1845 = vmatpush1.msra.mxu0 0.0
    %1846 = vmatprep.subr.mxu0 0.0
    %1847 = vmatpush1.msra.mxu0 0.0
    %1848 = vmatprep.subr.mxu0 0.0
    %1849 = vmatpush1.msra.mxu0 0.0
    %1850 = vmatprep.subr.mxu0 0.0
    %1851 = vmatpush1.msra.mxu0 0.0
    %1852 = vmatprep.subr.mxu0 0.0
    %1853 = vmatpush1.msra.mxu0 0.0
    %1854 = vmatprep.subr.mxu0 0.0
    %1855 = vmatpush1.msra.mxu0 0.0
    %1856 = vmatprep.subr.mxu0 0.0
    %1857 = vmatpush1.msra.mxu0 0.0
    %1858 = vmatprep.subr.mxu0 0.0
    %1859 = vmatpush1.msra.mxu0 0.0
    %1860 = vmatprep.subr.mxu0 0.0
    %1861 = vmatpush1.msra.mxu0 0.0
    %1862 = vmatprep.subr.mxu0 0.0
    %1863 = vmatpush1.msra.mxu0 0.0
    %1864 = vmatprep.subr.mxu0 0.0
    %1865 = vmatpush1.msra.mxu0 %v1827
    %1866 = vmatprep.subr.mxu0 0.0
    %1867 = vmatpush1.msra.mxu0 %v1826
    %1868 = vmatprep.subr.mxu0 0.0
    %1869 = vmatpush1.msra.mxu0 %v1825
    %1870 = vmatprep.subr.mxu0 0.0
    %1871 = vmatpush1.msra.mxu0 %v1824
    %1872 = vmatprep.subr.mxu0 0.0
    %1873 = vmatpush2.msra.mxu0 0.0
    %1874 = vmatprep.subr.mxu0 0.0
    %1875 = vmatpush2.msra.mxu0 0.0
    %1876 = vmatprep.subr.mxu0 0.0
    %1877 = vmatpush2.msra.mxu0 0.0
    %1878 = vmatprep.subr.mxu0 0.0
    %1879 = vmatpush2.msra.mxu0 0.0
    %1880 = vmatprep.subr.mxu0 0.0
    %1881 = vmatpush2.msra.mxu0 0.0
    %1882 = vmatprep.subr.mxu0 0.0
    %1883 = vmatpush2.msra.mxu0 0.0
    %1884 = vmatprep.subr.mxu0 0.0
    %1885 = vmatpush2.msra.mxu0 0.0
    %1886 = vmatprep.subr.mxu0 0.0
    %1887 = vmatpush2.msra.mxu0 0.0
    %1888 = vmatprep.subr.mxu0 0.0
    %1889 = vmatpush2.msra.mxu0 0.0
    %1890 = vmatprep.subr.mxu0 0.0
    %1891 = vmatpush2.msra.mxu0 0.0
    %1892 = vmatprep.subr.mxu0 0.0
    %1893 = vmatpush2.msra.mxu0 0.0
    %1894 = vmatprep.subr.mxu0 0.0
    %1895 = vmatpush2.msra.mxu0 0.0
    %1896 = vmatprep.subr.mxu0 0.0
    %1897 = vmatpush2.msra.mxu0 0.0
    %1898 = vmatprep.subr.mxu0 0.0
    %1899 = vmatpush2.msra.mxu0 0.0
    %1900 = vmatprep.subr.mxu0 0.0
    %1901 = vmatpush2.msra.mxu0 0.0
    %1902 = vmatprep.subr.mxu0 0.0
    %1903 = vmatpush2.msra.mxu0 0.0
    %1904 = vmatprep.mubr.f32.mxu0 0.0
    %1905 = vmatmul.mubr.f32.gmra.mxu0 %v1838
    %v1906 = vpop.f32.mrf.mxu0
    %v1907 = vadd.f32 %v1833, %v1906
    %v1908 = vpop.f32.mrf.mxu0
    %1909 = vdwg.mxu0
    %v1910 = vmax.f32 %v1907, 0.0
    %v1911 = vld [vmem:[%s8] sm:$0xff]
    %v1912 = vld [vmem:[%s8 + $0x8] sm:$0xff]
    %v1913 = vld [vmem:[%s9] sm:$0x1]
    %v1915 = vlaneseq
    %v1916 = vshrl.u32 %v1915, 7
    %v1917 = vsub.s32 0, %v1916
    %v1918 = vrot.slane %v1913, %v1917
    %vm1920 = vcmask 130048
    %v1922 = vsel %vm1920, %v1910, 0
    %1924 = vmatprep.subr.mxu0 0.0
    %1925 = vmatpush1.msra.mxu0 0.0
    %1926 = vmatprep.subr.mxu0 0.0
    %1927 = vmatpush1.msra.mxu0 0.0
    %1928 = vmatprep.subr.mxu0 0.0
    %1929 = vmatpush1.msra.mxu0 0.0
    %1930 = vmatprep.subr.mxu0 0.0
    %1931 = vmatpush1.msra.mxu0 0.0
    %1932 = vmatprep.subr.mxu0 0.0
    %1933 = vmatpush1.msra.mxu0 0.0
    %1934 = vmatprep.subr.mxu0 0.0
    %1935 = vmatpush1.msra.mxu0 0.0
    %1936 = vmatprep.subr.mxu0 0.0
    %1937 = vmatpush1.msra.mxu0 0.0
    %1938 = vmatprep.subr.mxu0 0.0
    %1939 = vmatpush1.msra.mxu0 0.0
    %1940 = vmatprep.subr.mxu0 0.0
    %1941 = vmatpush1.msra.mxu0 0.0
    %1942 = vmatprep.subr.mxu0 0.0
    %1943 = vmatpush1.msra.mxu0 0.0
    %1944 = vmatprep.subr.mxu0 0.0
    %1945 = vmatpush1.msra.mxu0 0.0
    %1946 = vmatprep.subr.mxu0 0.0
    %1947 = vmatpush1.msra.mxu0 0.0
    %1948 = vmatprep.subr.mxu0 0.0
    %1949 = vmatpush1.msra.mxu0 0.0
    %1950 = vmatprep.subr.mxu0 0.0
    %1951 = vmatpush1.msra.mxu0 0.0
    %1952 = vmatprep.subr.mxu0 0.0
    %1953 = vmatpush1.msra.mxu0 %v1912
    %1954 = vmatprep.subr.mxu0 0.0
    %1955 = vmatpush1.msra.mxu0 %v1911
    %1956 = vmatprep.subr.mxu0 0.0
    %1957 = vmatpush2.msra.mxu0 0.0
    %1958 = vmatprep.subr.mxu0 0.0
    %1959 = vmatpush2.msra.mxu0 0.0
    %1960 = vmatprep.subr.mxu0 0.0
    %1961 = vmatpush2.msra.mxu0 0.0
    %1962 = vmatprep.subr.mxu0 0.0
    %1963 = vmatpush2.msra.mxu0 0.0
    %1964 = vmatprep.subr.mxu0 0.0
    %1965 = vmatpush2.msra.mxu0 0.0
    %1966 = vmatprep.subr.mxu0 0.0
    %1967 = vmatpush2.msra.mxu0 0.0
    %1968 = vmatprep.subr.mxu0 0.0
    %1969 = vmatpush2.msra.mxu0 0.0
    %1970 = vmatprep.subr.mxu0 0.0
    %1971 = vmatpush2.msra.mxu0 0.0
    %1972 = vmatprep.subr.mxu0 0.0
    %1973 = vmatpush2.msra.mxu0 0.0
    %1974 = vmatprep.subr.mxu0 0.0
    %1975 = vmatpush2.msra.mxu0 0.0
    %1976 = vmatprep.subr.mxu0 0.0
    %1977 = vmatpush2.msra.mxu0 0.0
    %1978 = vmatprep.subr.mxu0 0.0
    %1979 = vmatpush2.msra.mxu0 0.0
    %1980 = vmatprep.subr.mxu0 0.0
    %1981 = vmatpush2.msra.mxu0 0.0
    %1982 = vmatprep.subr.mxu0 0.0
    %1983 = vmatpush2.msra.mxu0 0.0
    %1984 = vmatprep.subr.mxu0 0.0
    %1985 = vmatpush2.msra.mxu0 0.0
    %1986 = vmatprep.subr.mxu0 0.0
    %1987 = vmatpush2.msra.mxu0 0.0
    %1988 = vmatprep.mubr.f32.mxu0 0.0
    %1989 = vmatmul.mubr.f32.gmra.mxu0 %v1922
    %v1990 = vpop.f32.mrf.mxu0
    %v1991 = vadd.f32 %v1918, %v1990
    %v1992 = vpop.f32.mrf.mxu0
    %1993 = vdwg.mxu0
    %1994 = vst [vmem:[#allocation2] sm:$0xff] %v1991
    // Predicated region
    $region42: #{tpu_custom_call.1} parent=1 // pred_check
      _
    $region43: #{tpu_custom_call.1} parent=1 // pred_check_branch
      %1996 = sbr.rel (0) target = $region45
    $region44: #{tpu_custom_call.1} parent=1 // pred_region
      %s1998 = ssub.s32 128, 128
      %1999 = vsyncadd [#allocation3], %s1998
      %s2001 = sshll.u32 [#allocation2], 4
      %s2002 = int_to_ptr.vmem [resolvable:$true] %s2001
      %2004 = dma.vmem_to_hbm [thread:$0]  %s2002, 128, %s10, [#allocation3]
    $region45: #{tpu_custom_call.1} parent=1 // pred_fallthru
      _
    // Predicated region
    $region46: #{tpu_custom_call.1} parent=1 // pred_check
      _
    $region47: #{tpu_custom_call.1} parent=1 // pred_check_branch
      %2006 = sbr.rel (0) target = $region49
    $region48: #{tpu_custom_call.1} parent=1 // pred_region
      %2007 = dma.done [#allocation3], 128
    $region49: #{tpu_custom_call.1} parent=1 // pred_fallthru
      _
    %2008 = vsyncpa [#allocation3], 1

</llo_original>
